<compile_context>
chip_gen: v5e
topology: v5e:2x2
jax: 0.10.0
libtpu: 0.0.40
codegen_flags: <defaults>
</compile_context>

<pallas_src>
import math

import jax
import jax.numpy as jnp
from jax.experimental import pallas as pl
from jax.experimental.pallas import tpu as pltpu

HIDDEN = 768       # module default hidden_size
MLP_HIDDEN = 256   # quality-gate bottleneck


def _pick_tile(dim, candidates):
    """Largest candidate that divides dim; else largest candidate <= dim (pl.cdiv grid
    handles the padded remainder block); else the smallest candidate (single padded
    block). Never falls back to the raw full dim."""
    for c in candidates:
        if c <= dim and dim % c == 0:
            return c
    for c in candidates:
        if c <= dim:
            return c
    return candidates[-1]


# ---------------------------------------------------------------------------
# Kernel 1: progressive heads (all heads folded into the lane axis)
#   out[m, n*V + v] = hidden[m, :] @ head_w[n, :, v] + head_b[n, v]
# ---------------------------------------------------------------------------
def progressive_head_kernel(h_ref, w_ref, b_ref, out_ref):
    # h_ref: [TM, H] bf16, w_ref: [H, TV] bf16, b_ref: [1, TV] f32, out_ref: [TM, TV]
    acc = jnp.dot(h_ref[...], w_ref[...], preferred_element_type=jnp.float32)
    out_ref[...] = (acc + b_ref[...]).astype(out_ref.dtype)


# ---------------------------------------------------------------------------
# Kernel 2: quality gates, batched over all gates in one lane-dense MLP.
#   z1 = ReLU(pooled @ W1_all + b1_all)                       [B, N*MLP]
#   logits = z1 @ W2_blockdiag (lane-padded)  -> [:, :N] + b2 [B, N]
#   out = sigmoid(logits)                                      [B, N]
# ---------------------------------------------------------------------------
def quality_gate_kernel(pooled_ref, w1_ref, b1_ref, w2_ref, b2_ref, out_ref):
    z1 = jnp.dot(pooled_ref[...], w1_ref[...], preferred_element_type=jnp.float32)
    z1 = jnp.maximum(z1 + b1_ref[...], 0.0)                                # [B, N*MLP]
    logits_full = jnp.dot(z1, w2_ref[...], preferred_element_type=jnp.float32)  # [B, NPAD]
    n = out_ref.shape[1]
    logits = logits_full[:, :n] + b2_ref[...]                              # [B, N]
    # numerically-stable sigmoid: 0.5 * (tanh(x / 2) + 1)  (== jax.nn.sigmoid)
    out_ref[...] = (0.5 * (jnp.tanh(0.5 * logits) + 1.0)).astype(out_ref.dtype)


# ---------------------------------------------------------------------------
# wrapper
# ---------------------------------------------------------------------------
def progressive_generation_forward(hidden_states, params, *, out_dtype=jnp.bfloat16):
    head_w, head_b, gate_w1, gate_b1, gate_w2, gate_b2 = params
    B, S, H = hidden_states.shape
    N, _, V = head_w.shape
    MLP = gate_w1.shape[-1]
    M = B * S
    NV = N * V

    # ---- progressive heads: one folded matmul [M, H] @ [H, N*V] ----
    # bf16 operands (cast once here, outside the kernel), f32 accumulation in-kernel.
    hidden2d = hidden_states.reshape(M, H).astype(jnp.bfloat16)
    w_all = head_w.transpose(1, 0, 2).reshape(H, NV).astype(jnp.bfloat16)   # [H, N*V]
    b_all = head_b.reshape(1, NV).astype(jnp.float32)                        # [1, N*V]

    # bf16 sublane packing -> TM multiples of 16 only; TV multiples of 256/128.
    TM = _pick_tile(M, (512, 256, 128, 64, 32, 16))
    TV = _pick_tile(NV, (1024, 512, 256, 128))
    grid = (pl.cdiv(NV, TV), pl.cdiv(M, TM))   # lane-tile OUTER, M-tile INNER -> weights resident

    out_itemsize = jnp.dtype(out_dtype).itemsize
    tile_bytes = (TM * H * 2) + (H * TV * 2) + (TV * 4) + (TM * TV * out_itemsize)
    vmem_limit = int(min(48 << 20, max(3 * tile_bytes + (2 << 20), 16 << 20)))

    prog2d = pl.pallas_call(
        progressive_head_kernel,
        out_shape=jax.ShapeDtypeStruct((M, NV), out_dtype),
        grid=grid,
        in_specs=[
            pl.BlockSpec((TM, H), lambda j, i: (i, 0)),   # hidden M-tile (changes on inner axis)
            pl.BlockSpec((H, TV), lambda j, i: (0, j)),   # folded weight tile (resident across inner)
            pl.BlockSpec((1, TV), lambda j, i: (0, j)),   # folded bias tile
        ],
        out_specs=pl.BlockSpec((TM, TV), lambda j, i: (i, j)),
        compiler_params=pltpu.CompilerParams(
            dimension_semantics=("parallel", "parallel"),
            vmem_limit_bytes=vmem_limit,
        ),
    )(hidden2d, w_all, b_all)

    prog4d = prog2d.reshape(B, S, N, V)
    progressive_outputs = [prog4d[:, :, n, :] for n in range(N)]

    # ---- quality gates ----
    # Mean-pool done as a tiny XLA reduce (per perf review: no second Pallas streaming
    # pass over hidden_states); the batched gate MLP runs in one small Pallas kernel.
    pooled = hidden_states.astype(jnp.float32).mean(axis=1)                 # [B, H]
    pooled_bf16 = pooled.astype(jnp.bfloat16)
    w1_all = gate_w1.transpose(1, 0, 2).reshape(H, N * MLP).astype(jnp.bfloat16)  # [H, N*MLP]
    b1_all = gate_b1.reshape(1, N * MLP).astype(jnp.float32)                       # [1, N*MLP]

    # Block-diagonal second-layer weights, lane-padded to 128 for a dense MXU tile.
    NPAD = ((N + 127) // 128) * 128
    eye = jnp.eye(N, NPAD, dtype=jnp.float32)                               # [N, NPAD]
    w2_blk = (gate_w2.astype(jnp.float32)[:, :, None] * eye[:, None, :]).reshape(N * MLP, NPAD)
    b2_row = gate_b2.reshape(1, N).astype(jnp.float32)

    quality = pl.pallas_call(
        quality_gate_kernel,
        out_shape=jax.ShapeDtypeStruct((B, N), jnp.float32),
        grid=(1,),
        in_specs=[
            pl.BlockSpec((B, H), lambda i: (0, 0)),          # pooled hidden
            pl.BlockSpec((H, N * MLP), lambda i: (0, 0)),    # batched gate W1
            pl.BlockSpec((1, N * MLP), lambda i: (0, 0)),    # batched gate b1
            pl.BlockSpec((N * MLP, NPAD), lambda i: (0, 0)), # block-diagonal gate W2
            pl.BlockSpec((1, N), lambda i: (0, 0)),          # gate b2
        ],
        out_specs=pl.BlockSpec((B, N), lambda i: (0, 0)),
    )(pooled_bf16, w1_all, b1_all, w2_blk, b2_row)

    quality_scores = [quality[:, n:n + 1] for n in range(N)]
    return {
        "progressive_outputs": progressive_outputs,
        "quality_scores": quality_scores,
        "final_output": progressive_outputs[-1],
        "base_outputs": hidden_states,
    }


def init_params(key, num_steps, hidden=HIDDEN, vocab=1024, mlp=MLP_HIDDEN):
    ks = jax.random.split(key, 6)
    head_w = jax.random.normal(ks[0], (num_steps, hidden, vocab), jnp.float32) / math.sqrt(hidden)
    head_b = 0.01 * jax.random.normal(ks[1], (num_steps, 1, vocab), jnp.float32)
    gate_w1 = jax.random.normal(ks[2], (num_steps, hidden, mlp), jnp.float32) / math.sqrt(hidden)
    gate_b1 = 0.01 * jax.random.normal(ks[3], (num_steps, 1, mlp), jnp.float32)
    gate_w2 = jax.random.normal(ks[4], (num_steps, mlp), jnp.float32) / math.sqrt(mlp)
    gate_b2 = 0.01 * jax.random.normal(ks[5], (1, num_steps), jnp.float32)
    return head_w, head_b, gate_w1, gate_b1, gate_w2, gate_b2


if __name__ == "__main__":
    progressive_steps = [1, 2, 4]          # 3 progressive refinement stages
    B, S, H, V = 2, 8, HIDDEN, 1024        # small test shapes (module default hidden=768)
    N = len(progressive_steps)

    key = jax.random.PRNGKey(0)
    k_param, k_hidden = jax.random.split(key, 2)
    params = init_params(k_param, N, hidden=H, vocab=V)
    hidden_states = jax.random.normal(k_hidden, (B, S, H), jnp.float32)

    out = progressive_generation_forward(hidden_states, params, out_dtype=jnp.bfloat16)
    jax.block_until_ready(out["final_output"])
    jax.block_until_ready(out["quality_scores"][-1])

    # shape checks
    assert len(out["progressive_outputs"]) == N
    assert all(p.shape == (B, S, V) for p in out["progressive_outputs"])
    assert all(q.shape == (B, 1) for q in out["quality_scores"])
    assert out["final_output"].shape == (B, S, V)

    # numeric check against a pure-JAX reference (loose tol: bf16 operands + bf16 output)
    head_w, head_b, gate_w1, gate_b1, gate_w2, gate_b2 = params
    ref_prog = jnp.einsum("bsh,nhv->nbsv", hidden_states, head_w) + head_b[:, :, None, :]
    pooled_ref = hidden_states.mean(axis=1)
    z1_ref = jnp.maximum(jnp.einsum("bh,nhm->nbm", pooled_ref, gate_w1) + gate_b1, 0.0)
    q_ref = jax.nn.sigmoid(jnp.einsum("nbm,nm->nb", z1_ref, gate_w2) + gate_b2[0][:, None])
    quality_ref = q_ref.T                                                      # [B, N]

    prog_stack = jnp.stack(out["progressive_outputs"], axis=0).astype(jnp.float32)  # [N, B, S, V]
    quality_stack = jnp.concatenate(out["quality_scores"], axis=-1).astype(jnp.float32)  # [B, N]
    err_head = float(jnp.max(jnp.abs(prog_stack - ref_prog)))
    err_gate = float(jnp.max(jnp.abs(quality_stack - quality_ref)))
    assert err_head < 0.1, f"head max abs err {err_head}"
    assert err_gate < 0.05, f"gate max abs err {err_gate}"

    print("KERNEL_OK")
</pallas_src>

<mosaic_0001>
module attributes {stable_mosaic.version = 11 : i64} {
  func.func @progressive_head_kernel(%arg0: i32, %arg1: i32, %arg2: memref<16x768xbf16, #tpu.memory_space<vmem>>, %arg3: memref<768x1024xbf16, #tpu.memory_space<vmem>>, %arg4: memref<1x1024xf32, #tpu.memory_space<vmem>>, %arg5: memref<16x1024xbf16, #tpu.memory_space<vmem>>) attributes {dimension_semantics = [#tpu.dimension_semantics<parallel>, #tpu.dimension_semantics<parallel>], iteration_bounds = array<i64: 3, 1>, scalar_prefetch = 0 : i64, scratch_operands = 0 : i64, tpu.core_type = #tpu.core_type<tc>, window_params = [{transform_indices = @transform_0, window_bounds = array<i64: 16, 768>}, {transform_indices = @transform_1, window_bounds = array<i64: 768, 1024>}, {transform_indices = @transform_2, window_bounds = array<i64: 1, 1024>}, {transform_indices = @transform_3, window_bounds = array<i64: 16, 1024>}]} {
    %c0 = arith.constant 0 : index
    %c0_0 = arith.constant 0 : index
    %0 = vector.load %arg2[%c0, %c0_0] : memref<16x768xbf16, #tpu.memory_space<vmem>>, vector<16x768xbf16>
    %c0_1 = arith.constant 0 : index
    %c0_2 = arith.constant 0 : index
    %1 = vector.load %arg3[%c0_1, %c0_2] : memref<768x1024xbf16, #tpu.memory_space<vmem>>, vector<768x1024xbf16>
    %cst = arith.constant dense<0.000000e+00> : vector<16x1024xf32>
    %2 = tpu.matmul %0, %1, %cst {dimension_numbers = #tpu.dot_dimension_numbers<[1], [0], [0], [1], [0, 0, 1, 1], [], []>} : vector<16x768xbf16>, vector<768x1024xbf16>, vector<16x1024xf32> -> vector<16x1024xf32>
    %c0_3 = arith.constant 0 : index
    %c0_4 = arith.constant 0 : index
    %3 = vector.load %arg4[%c0_3, %c0_4] : memref<1x1024xf32, #tpu.memory_space<vmem>>, vector<1x1024xf32>
    %4 = vector.broadcast %3 : vector<1x1024xf32> to vector<16x1024xf32>
    %5 = arith.addf %2, %4 : vector<16x1024xf32>
    %6 = arith.truncf %5 : vector<16x1024xf32> to vector<16x1024xbf16>
    %c0_5 = arith.constant 0 : index
    %c0_6 = arith.constant 0 : index
    %7 = vector.load %arg5[%c0_5, %c0_6] : memref<16x1024xbf16, #tpu.memory_space<vmem>>, vector<16x1024xbf16>
    tpu.vector_store %arg5[%c0_5, %c0_6], %6 {strides = array<i32>} : memref<16x1024xbf16, #tpu.memory_space<vmem>>, vector<16x1024xbf16>,
    return
  }
  func.func @transform_0(%arg0: i32, %arg1: i32) -> (i32, i32) {
    %c0_i32 = arith.constant 0 : i32
    %c0_i32_0 = arith.constant 0 : i32
    return %arg1, %c0_i32 : i32, i32
  }
  func.func @transform_1(%arg0: i32, %arg1: i32) -> (i32, i32) {
    %c0_i32 = arith.constant 0 : i32
    %c0_i32_0 = arith.constant 0 : i32
    return %c0_i32, %arg0 : i32, i32
  }
  func.func @transform_2(%arg0: i32, %arg1: i32) -> (i32, i32) {
    %c0_i32 = arith.constant 0 : i32
    %c0_i32_0 = arith.constant 0 : i32
    return %c0_i32, %arg0 : i32, i32
  }
  func.func @transform_3(%arg0: i32, %arg1: i32) -> (i32, i32) {
    %c0_i32 = arith.constant 0 : i32
    return %arg1, %arg0 : i32, i32
  }
}

</mosaic_0001>

<llo_original>
// kernel: tpu_custom_call.1
$region0: #{tpu_custom_call.1}
  #allocation0 [shape = 'u32[]', space=smem, size = 0x4, offset = 0x4, fixed_abs, tag = 'smem constant byte address 0x4 - core index']
  #allocation1 [shape = 'u32[72,128]{1,0:T(1,128)}', space=vmem, size = 0x9000, scoped, tag = 'internal scratch']
  %s0 = inlined_call_operand.hbm [shape: bf16[16,768], index: 0, kind: input, shape index: {}]
  %s1 = inlined_call_operand.hbm [shape: bf16[768,3072], index: 1, kind: input, shape index: {}]
  %s2 = inlined_call_operand.hbm [shape: f32[1,3072], index: 2, kind: input, shape index: {}]
  %s3 = inlined_call_operand.hbm [shape: bf16[16,3072], index: 3, kind: output, shape index: {}]
  %s4 = sld [smem:[#allocation0]]
  $region57: #{tpu_custom_call.1} parent=0
    _
  %s6 = ssub.s32 1, %s4
  %s7 = scalar_select 0, %s6, %s4
  $region1: #{tpu_custom_call.1} parent=0
    #allocation2 [shape = 'u8[24576]{0}', space=vmem, size = 0x6000, scoped, tag = 'input window, operand 0, single buffered']
    #allocation3 [shape = 's32[2]{0}', space=sflag, size = 0x8, scoped, tag = 'scoped memory for tpu_custom_call.1']
    #allocation4 [shape = 's32[2]{0}', space=sflag, size = 0x8, scoped, tag = 'scoped memory for tpu_custom_call.1']
    #allocation5 [shape = 'u8[3145728]{0}', space=vmem, size = 0x300000, scoped, tag = 'input window, operand 1']
    #allocation6 [shape = 's32[2]{0}', space=sflag, size = 0x8, scoped, tag = 'scoped memory for tpu_custom_call.1']
    #allocation7 [shape = 'u8[8192]{0}', space=vmem, size = 0x2000, scoped, tag = 'input window, operand 2']
    #allocation8 [shape = 'u8[65536]{0}', space=vmem, size = 0x10000, scoped, tag = 'output window, operand 0']
    %8 = vsyncpa [#allocation3], 0
    %9 = vsyncpa [#allocation6], 0
    %s10 = scalar_lea.sflag [#allocation6], 1
    %11 = vsyncpa %s10, 0
    %12 = vsyncpa [#allocation4], 0
    %s13 = scalar_lea.sflag [#allocation4], 1
    %14 = vsyncpa %s13, 0
    loop: start=0, step=1, limit=5
    $region2: #{tpu_custom_call.1} parent=1 // loop_pre_header
      _
    $region3: #{tpu_custom_call.1} parent=1 // loop_header
      %s16 = sphi 0, %s20
      %p17 = scmp.ge.s32.totalorder %s16, 5
      %s23 = sphi 0, %s35
      %s24 = sphi 0, %s31
      %s25 = sphi 0, %s23
      %s26 = sphi 0, %s24
      %s27 = sphi 0, %s25
      %s28 = sphi 0, %s26
      %s38 = sphi 0, %s40
      %s41 = sphi 0, %s38
      %s42 = sphi 0, %s41
      %s58 = sphi 0, %s42
      %s64 = sphi 0, %s66
      %s67 = sphi 0, %s64
      %s68 = sphi 0, %s67
      %s84 = sphi 0, %s68
      %s90 = sphi 0, %s92
      %s93 = sphi 0, %s90
      %s94 = sphi 0, %s93
      %s110 = sphi 0, %s94
      %s118 = sphi 0, %s120
      %s121 = sphi 0, %s118
      %s122 = sphi 0, %s121
      %s138 = sphi 0, %s122
    $region4: #{tpu_custom_call.1} parent=1 // loop_header_branch
      %19 = sbr.rel (%p17) target = $region8
    $region5: #{tpu_custom_call.1} parent=1 // loop_body
      %s21 = ssub.s32 %s16, 1
      %s22 = ssub.s32 %s16, 2
      %s29 = sadd.s32 1, %s24
      %p30 = scmp.ge.s32.totalorder %s29, 1
      %s31 = scalar_select %p30, 0, %s29
      %s32 = sadd.s32 1, %s23
      %s33 = scalar_select %p30, %s32, %s23
      %p34 = scmp.ge.s32.totalorder %s33, 3
      %s35 = scalar_select %p34, 0, %s33
      %s36 = ssub.s32 %s24, %s31
      %p37 = scmp.eq.s32.totalorder %s36, 0
      %s39 = sadd.s32 %s38, 1
      %s40 = scalar_select %p37, %s38, %s39
      %p43 = pneg %p37
      %p44 = scmp.eq.s32.totalorder %s16, 2
      %p45 = por %p43, %p44
      %p46 = scmp.ne.s32.totalorder %s38, %s41
      %p47 = scmp.eq.s32.totalorder %s16, 0
      %p48 = por %p46, %p47
      %p49 = scmp.ne.s32.totalorder %s38, %s41
      %p50 = scmp.eq.s32.totalorder %s21, 2
      %p51 = por %p49, %p50
      %p52 = scmp.ne.s32.totalorder %s41, %s42
      %p53 = scmp.eq.s32.totalorder %s21, 0
      %p54 = por %p52, %p53
      %p55 = scmp.ne.s32.totalorder %s41, %s42
      %p56 = scmp.eq.s32.totalorder %s22, 2
      %p57 = por %p55, %p56
      %p59 = scmp.ne.s32.totalorder %s42, %s58
      %p60 = scmp.eq.s32.totalorder %s22, 0
      %p61 = por %p59, %p60
      %s62 = ssub.s32 %s23, %s35
      %p63 = scmp.eq.s32.totalorder %s62, 0
      %s65 = sadd.s32 %s64, 1
      %s66 = scalar_select %p63, %s64, %s65
      %p69 = pneg %p63
      %p70 = scmp.eq.s32.totalorder %s16, 2
      %p71 = por %p69, %p70
      %p72 = scmp.ne.s32.totalorder %s64, %s67
      %p73 = scmp.eq.s32.totalorder %s16, 0
      %p74 = por %p72, %p73
      %p75 = scmp.ne.s32.totalorder %s64, %s67
      %p76 = scmp.eq.s32.totalorder %s21, 2
      %p77 = por %p75, %p76
      %p78 = scmp.ne.s32.totalorder %s67, %s68
      %p79 = scmp.eq.s32.totalorder %s21, 0
      %p80 = por %p78, %p79
      %p81 = scmp.ne.s32.totalorder %s67, %s68
      %p82 = scmp.eq.s32.totalorder %s22, 2
      %p83 = por %p81, %p82
      %p85 = scmp.ne.s32.totalorder %s68, %s84
      %p86 = scmp.eq.s32.totalorder %s22, 0
      %p87 = por %p85, %p86
      %s88 = ssub.s32 %s23, %s35
      %p89 = scmp.eq.s32.totalorder %s88, 0
      %s91 = sadd.s32 %s90, 1
      %s92 = scalar_select %p89, %s90, %s91
      %p95 = pneg %p89
      %p96 = scmp.eq.s32.totalorder %s16, 2
      %p97 = por %p95, %p96
      %p98 = scmp.ne.s32.totalorder %s90, %s93
      %p99 = scmp.eq.s32.totalorder %s16, 0
      %p100 = por %p98, %p99
      %p101 = scmp.ne.s32.totalorder %s90, %s93
      %p102 = scmp.eq.s32.totalorder %s21, 2
      %p103 = por %p101, %p102
      %p104 = scmp.ne.s32.totalorder %s93, %s94
      %p105 = scmp.eq.s32.totalorder %s21, 0
      %p106 = por %p104, %p105
      %p107 = scmp.ne.s32.totalorder %s93, %s94
      %p108 = scmp.eq.s32.totalorder %s22, 2
      %p109 = por %p107, %p108
      %p111 = scmp.ne.s32.totalorder %s94, %s110
      %p112 = scmp.eq.s32.totalorder %s22, 0
      %p113 = por %p111, %p112
      %s114 = ssub.s32 %s24, %s31
      %s115 = ssub.s32 %s23, %s35
      %s116 = sor.u32 %s114, %s115
      %p117 = scmp.eq.s32.totalorder %s116, 0
      %s119 = sadd.s32 %s118, 1
      %s120 = scalar_select %p117, %s118, %s119
      %p123 = pneg %p117
      %p124 = scmp.eq.s32.totalorder %s16, 2
      %p125 = por %p123, %p124
      %p126 = scmp.ne.s32.totalorder %s118, %s121
      %p127 = scmp.eq.s32.totalorder %s16, 0
      %p128 = por %p126, %p127
      %p129 = scmp.ne.s32.totalorder %s118, %s121
      %p130 = scmp.eq.s32.totalorder %s21, 2
      %p131 = por %p129, %p130
      %p132 = scmp.ne.s32.totalorder %s121, %s122
      %p133 = scmp.eq.s32.totalorder %s21, 0
      %p134 = por %p132, %p133
      %p135 = scmp.ne.s32.totalorder %s121, %s122
      %p136 = scmp.eq.s32.totalorder %s22, 2
      %p137 = por %p135, %p136
      %p139 = scmp.ne.s32.totalorder %s122, %s138
      %p140 = scmp.eq.s32.totalorder %s22, 0
      %p141 = por %p139, %p140
      %p142 = scmp.le.s32.totalorder 1, %s16
      %p143 = scmp.lt.s32.totalorder %s16, 4
      %p144 = pnand %p142, %p143
      %p145 = pneg %p144
      // Predicated region
      $region9: #{tpu_custom_call.1} parent=5 // pred_check
        _
      $region10: #{tpu_custom_call.1} parent=5 // pred_check_branch
        %147 = sbr.rel (%p144) target = $region12
      $region11: #{tpu_custom_call.1} parent=5 // pred_region
        %s148 = ssub.s32 %s16, 1
        // Predicated region
        $region13: #{tpu_custom_call.1} parent=11 // pred_check
          %p149 = pneg %p54
        $region14: #{tpu_custom_call.1} parent=11 // pred_check_branch
          %151 = sbr.rel (%p149) target = $region16
        $region15: #{tpu_custom_call.1} parent=11 // pred_region
          %s152 = smul.u32 2, %s26
          %154 = vsyncadd [#allocation3], 0
          %s155 = smul.addr %s152, 6
          %s156 = smul.addr %s155, 4
          %s157 = scalar_lea.hbm %s0, %s156
          %s158 = sshll.u32 %s157, 4
          %s159 = int_to_ptr.hbm [resolvable:$true] %s158
          %s160 = sshll.u32 [#allocation2], 4
          %s161 = int_to_ptr.vmem [resolvable:$true] %s160
          %166 = dma.hbm_to_vmem [thread:$0]  %s159, 768, %s161, [#allocation3], 384, 384, 24
        $region16: #{tpu_custom_call.1} parent=11 // pred_fallthru
          _
      $region12: #{tpu_custom_call.1} parent=5 // pred_fallthru
        _
      %p167 = scmp.lt.s32.totalorder %s16, 3
      // Predicated region
      $region17: #{tpu_custom_call.1} parent=5 // pred_check
        %p168 = pneg %p167
      $region18: #{tpu_custom_call.1} parent=5 // pred_check_branch
        %170 = sbr.rel (%p168) target = $region20
      $region19: #{tpu_custom_call.1} parent=5 // pred_region
        // Predicated region
        $region21: #{tpu_custom_call.1} parent=19 // pred_check
          %p171 = pneg %p74
        $region22: #{tpu_custom_call.1} parent=19 // pred_check_branch
          %173 = sbr.rel (%p171) target = $region24
        $region23: #{tpu_custom_call.1} parent=19 // pred_region
          %s174 = sand.u32 %s16, 1
          %s175 = scalar_lea.sflag [#allocation6], %s174
          %s176 = sand.u32 %s64, 1
          %s177 = smul.addr %s176, 3072
          %s178 = scalar_lea.vmem [#allocation5], %s177
          %s179 = smul.u32 8, %s23
          %181 = vsyncadd %s175, 0
          %s182 = smul.addr %s179, 4
          %s183 = scalar_lea.hbm %s1, %s182
          %s184 = sshll.u32 %s183, 4
          %s185 = int_to_ptr.hbm [resolvable:$true] %s184
          %s186 = sshll.u32 %s178, 4
          %s187 = int_to_ptr.vmem [resolvable:$true] %s186
          %192 = dma.hbm_to_vmem [thread:$0]  %s185, 49152, %s187, %s175, 1536, 512, 32
        $region24: #{tpu_custom_call.1} parent=19 // pred_fallthru
          _
        // Predicated region
        $region25: #{tpu_custom_call.1} parent=19 // pred_check
          %p193 = pneg %p100
        $region26: #{tpu_custom_call.1} parent=19 // pred_check_branch
          %195 = sbr.rel (%p193) target = $region28
        $region27: #{tpu_custom_call.1} parent=19 // pred_region
          %s196 = sand.u32 %s16, 1
          %s197 = scalar_lea.sflag [#allocation6], %s196
          %s198 = sand.u32 %s90, 1
          %s199 = smul.addr %s198, 8
          %s200 = scalar_lea.vmem [#allocation7], %s199
          %s201 = smul.u32 8, %s23
          %203 = vsyncadd %s197, 0
          %s204 = scalar_lea.hbm %s2, %s201
          %s206 = sshll.u32 %s204, 4
          %s207 = int_to_ptr.hbm [resolvable:$true] %s206
          %s208 = sshll.u32 %s200, 4
          %s209 = int_to_ptr.vmem [resolvable:$true] %s208
          %211 = dma.hbm_to_vmem [thread:$0]  %s207, 128, %s209, %s197
        $region28: #{tpu_custom_call.1} parent=19 // pred_fallthru
          _
      $region20: #{tpu_custom_call.1} parent=5 // pred_fallthru
        _
      %p212 = scmp.le.s32.totalorder 1, %s16
      %p213 = scmp.lt.s32.totalorder %s16, 4
      %p214 = pnand %p212, %p213
      %p215 = pneg %p214
      // Predicated region
      $region29: #{tpu_custom_call.1} parent=5 // pred_check
        _
      $region30: #{tpu_custom_call.1} parent=5 // pred_check_branch
        %217 = sbr.rel (%p214) target = $region32
      $region31: #{tpu_custom_call.1} parent=5 // pred_region
        %s218 = ssub.s32 %s16, 1
        // Predicated region
        $region33: #{tpu_custom_call.1} parent=31 // pred_check
          %p219 = pneg %p54
        $region34: #{tpu_custom_call.1} parent=31 // pred_check_branch
          %221 = sbr.rel (%p219) target = $region36
        $region35: #{tpu_custom_call.1} parent=31 // pred_region
          %223 = dma.done [#allocation3], 768
        $region36: #{tpu_custom_call.1} parent=31 // pred_fallthru
          _
        %s224 = sand.u32 %s21, 1
        %s225 = scalar_lea.sflag [#allocation6], %s224
        %s226 = sand.u32 %s67, 1
        %s227 = smul.addr %s226, 3072
        %s228 = scalar_lea.vmem [#allocation5], %s227
        // Predicated region
        $region37: #{tpu_custom_call.1} parent=31 // pred_check
          %p229 = pneg %p80
        $region38: #{tpu_custom_call.1} parent=31 // pred_check_branch
          %231 = sbr.rel (%p229) target = $region40
        $region39: #{tpu_custom_call.1} parent=31 // pred_region
          %233 = dma.done %s225, 49152
        $region40: #{tpu_custom_call.1} parent=31 // pred_fallthru
          _
        %s234 = sand.u32 %s21, 1
        %s235 = scalar_lea.sflag [#allocation6], %s234
        %s236 = sand.u32 %s93, 1
        %s237 = smul.addr %s236, 8
        %s238 = scalar_lea.vmem [#allocation7], %s237
        // Predicated region
        $region41: #{tpu_custom_call.1} parent=31 // pred_check
          %p239 = pneg %p106
        $region42: #{tpu_custom_call.1} parent=31 // pred_check_branch
          %241 = sbr.rel (%p239) target = $region44
        $region43: #{tpu_custom_call.1} parent=31 // pred_region
          %243 = dma.done %s235, 128
        $region44: #{tpu_custom_call.1} parent=31 // pred_fallthru
          _
        %p244 = pneg %p54
        %p245 = pneg %p51
        %s246 = sand.u32 %s21, 1
        %s247 = scalar_lea.sflag [#allocation6], %s246
        %s248 = sand.u32 %s67, 1
        %s249 = smul.addr %s248, 3072
        %s250 = scalar_lea.vmem [#allocation5], %s249
        %p251 = pneg %p80
        %p252 = pneg %p77
        %s253 = sand.u32 %s21, 1
        %s254 = scalar_lea.sflag [#allocation6], %s253
        %s255 = sand.u32 %s93, 1
        %s256 = smul.addr %s255, 8
        %s257 = scalar_lea.vmem [#allocation7], %s256
        %p258 = pneg %p106
        %p259 = pneg %p103
        %p260 = pneg %p134
        %p261 = pneg %p131
        %s262 = sand.u32 %s121, 1
        %s263 = scalar_lea.sflag [#allocation4], %s262
        %s264 = sand.u32 %s121, 1
        %s265 = smul.addr %s264, 64
        %s266 = scalar_lea.vmem [#allocation8], %s265
        %s267 = smul.u32 2, %s26
        %s268 = smul.u32 8, %s25
        %s269 = smul.u32 8, %s25
        %s270 = smul.u32 2, %s26
        %s271 = smul.u32 8, %s25
        %v272 = vld [vmem:[#allocation2] sm:$0xff]
        %v273 = vld [vmem:[#allocation2 + $0x8] sm:$0xff]
        %v274 = vld [vmem:[#allocation2 + $0x10] sm:$0xff]
        %v275 = vld [vmem:[#allocation2 + $0x18] sm:$0xff]
        %v276 = vld [vmem:[#allocation2 + $0x20] sm:$0xff]
        %v277 = vld [vmem:[#allocation2 + $0x28] sm:$0xff]
        %v278 = vld [vmem:[%s228] sm:$0xff]
        %v279 = vld [vmem:[%s228 + $0x8] sm:$0xff]
        %v280 = vld [vmem:[%s228 + $0x10] sm:$0xff]
        %v281 = vld [vmem:[%s228 + $0x18] sm:$0xff]
        %v282 = vld [vmem:[%s228 + $0x20] sm:$0xff]
        %v283 = vld [vmem:[%s228 + $0x28] sm:$0xff]
        %v284 = vld [vmem:[%s228 + $0x30] sm:$0xff]
        %v285 = vld [vmem:[%s228 + $0x38] sm:$0xff]
        %v286 = vld [vmem:[%s228 + $0x40] sm:$0xff]
        %v287 = vld [vmem:[%s228 + $0x48] sm:$0xff]
        %v288 = vld [vmem:[%s228 + $0x50] sm:$0xff]
        %v289 = vld [vmem:[%s228 + $0x58] sm:$0xff]
        %v290 = vld [vmem:[%s228 + $0x60] sm:$0xff]
        %v291 = vld [vmem:[%s228 + $0x68] sm:$0xff]
        %v292 = vld [vmem:[%s228 + $0x70] sm:$0xff]
        %v293 = vld [vmem:[%s228 + $0x78] sm:$0xff]
        %v294 = vld [vmem:[%s228 + $0x80] sm:$0xff]
        %v295 = vld [vmem:[%s228 + $0x88] sm:$0xff]
        %v296 = vld [vmem:[%s228 + $0x90] sm:$0xff]
        %v297 = vld [vmem:[%s228 + $0x98] sm:$0xff]
        %v298 = vld [vmem:[%s228 + $0xa0] sm:$0xff]
        %v299 = vld [vmem:[%s228 + $0xa8] sm:$0xff]
        %v300 = vld [vmem:[%s228 + $0xb0] sm:$0xff]
        %v301 = vld [vmem:[%s228 + $0xb8] sm:$0xff]
        %v302 = vld [vmem:[%s228 + $0xc0] sm:$0xff]
        %v303 = vld [vmem:[%s228 + $0xc8] sm:$0xff]
        %v304 = vld [vmem:[%s228 + $0xd0] sm:$0xff]
        %v305 = vld [vmem:[%s228 + $0xd8] sm:$0xff]
        %v306 = vld [vmem:[%s228 + $0xe0] sm:$0xff]
        %v307 = vld [vmem:[%s228 + $0xe8] sm:$0xff]
        %v308 = vld [vmem:[%s228 + $0xf0] sm:$0xff]
        %v309 = vld [vmem:[%s228 + $0xf8] sm:$0xff]
        %v310 = vld [vmem:[%s228 + $0x100] sm:$0xff]
        %v311 = vld [vmem:[%s228 + $0x108] sm:$0xff]
        %v312 = vld [vmem:[%s228 + $0x110] sm:$0xff]
        %v313 = vld [vmem:[%s228 + $0x118] sm:$0xff]
        %v314 = vld [vmem:[%s228 + $0x120] sm:$0xff]
        %v315 = vld [vmem:[%s228 + $0x128] sm:$0xff]
        %v316 = vld [vmem:[%s228 + $0x130] sm:$0xff]
        %v317 = vld [vmem:[%s228 + $0x138] sm:$0xff]
        %v318 = vld [vmem:[%s228 + $0x140] sm:$0xff]
        %v319 = vld [vmem:[%s228 + $0x148] sm:$0xff]
        %v320 = vld [vmem:[%s228 + $0x150] sm:$0xff]
        %v321 = vld [vmem:[%s228 + $0x158] sm:$0xff]
        %v322 = vld [vmem:[%s228 + $0x160] sm:$0xff]
        %v323 = vld [vmem:[%s228 + $0x168] sm:$0xff]
        %v324 = vld [vmem:[%s228 + $0x170] sm:$0xff]
        %v325 = vld [vmem:[%s228 + $0x178] sm:$0xff]
        %v326 = vld [vmem:[%s228 + $0x180] sm:$0xff]
        %v327 = vld [vmem:[%s228 + $0x188] sm:$0xff]
        %v328 = vld [vmem:[%s228 + $0x190] sm:$0xff]
        %v329 = vld [vmem:[%s228 + $0x198] sm:$0xff]
        %v330 = vld [vmem:[%s228 + $0x1a0] sm:$0xff]
        %v331 = vld [vmem:[%s228 + $0x1a8] sm:$0xff]
        %v332 = vld [vmem:[%s228 + $0x1b0] sm:$0xff]
        %v333 = vld [vmem:[%s228 + $0x1b8] sm:$0xff]
        %v334 = vld [vmem:[%s228 + $0x1c0] sm:$0xff]
        %v335 = vld [vmem:[%s228 + $0x1c8] sm:$0xff]
        %v336 = vld [vmem:[%s228 + $0x1d0] sm:$0xff]
        %v337 = vld [vmem:[%s228 + $0x1d8] sm:$0xff]
        %v338 = vld [vmem:[%s228 + $0x1e0] sm:$0xff]
        %v339 = vld [vmem:[%s228 + $0x1e8] sm:$0xff]
        %v340 = vld [vmem:[%s228 + $0x1f0] sm:$0xff]
        %v341 = vld [vmem:[%s228 + $0x1f8] sm:$0xff]
        %v342 = vld [vmem:[%s228 + $0x200] sm:$0xff]
        %v343 = vld [vmem:[%s228 + $0x208] sm:$0xff]
        %v344 = vld [vmem:[%s228 + $0x210] sm:$0xff]
        %v345 = vld [vmem:[%s228 + $0x218] sm:$0xff]
        %v346 = vld [vmem:[%s228 + $0x220] sm:$0xff]
        %v347 = vld [vmem:[%s228 + $0x228] sm:$0xff]
        %v348 = vld [vmem:[%s228 + $0x230] sm:$0xff]
        %v349 = vld [vmem:[%s228 + $0x238] sm:$0xff]
        %v350 = vld [vmem:[%s228 + $0x240] sm:$0xff]
        %v351 = vld [vmem:[%s228 + $0x248] sm:$0xff]
        %v352 = vld [vmem:[%s228 + $0x250] sm:$0xff]
        %v353 = vld [vmem:[%s228 + $0x258] sm:$0xff]
        %v354 = vld [vmem:[%s228 + $0x260] sm:$0xff]
        %v355 = vld [vmem:[%s228 + $0x268] sm:$0xff]
        %v356 = vld [vmem:[%s228 + $0x270] sm:$0xff]
        %v357 = vld [vmem:[%s228 + $0x278] sm:$0xff]
        %v358 = vld [vmem:[%s228 + $0x280] sm:$0xff]
        %v359 = vld [vmem:[%s228 + $0x288] sm:$0xff]
        %v360 = vld [vmem:[%s228 + $0x290] sm:$0xff]
        %v361 = vld [vmem:[%s228 + $0x298] sm:$0xff]
        %v362 = vld [vmem:[%s228 + $0x2a0] sm:$0xff]
        %v363 = vld [vmem:[%s228 + $0x2a8] sm:$0xff]
        %v364 = vld [vmem:[%s228 + $0x2b0] sm:$0xff]
        %v365 = vld [vmem:[%s228 + $0x2b8] sm:$0xff]
        %v366 = vld [vmem:[%s228 + $0x2c0] sm:$0xff]
        %v367 = vld [vmem:[%s228 + $0x2c8] sm:$0xff]
        %v368 = vld [vmem:[%s228 + $0x2d0] sm:$0xff]
        %v369 = vld [vmem:[%s228 + $0x2d8] sm:$0xff]
        %v370 = vld [vmem:[%s228 + $0x2e0] sm:$0xff]
        %v371 = vld [vmem:[%s228 + $0x2e8] sm:$0xff]
        %v372 = vld [vmem:[%s228 + $0x2f0] sm:$0xff]
        %v373 = vld [vmem:[%s228 + $0x2f8] sm:$0xff]
        %v374 = vld [vmem:[%s228 + $0x300] sm:$0xff]
        %v375 = vld [vmem:[%s228 + $0x308] sm:$0xff]
        %v376 = vld [vmem:[%s228 + $0x310] sm:$0xff]
        %v377 = vld [vmem:[%s228 + $0x318] sm:$0xff]
        %v378 = vld [vmem:[%s228 + $0x320] sm:$0xff]
        %v379 = vld [vmem:[%s228 + $0x328] sm:$0xff]
        %v380 = vld [vmem:[%s228 + $0x330] sm:$0xff]
        %v381 = vld [vmem:[%s228 + $0x338] sm:$0xff]
        %v382 = vld [vmem:[%s228 + $0x340] sm:$0xff]
        %v383 = vld [vmem:[%s228 + $0x348] sm:$0xff]
        %v384 = vld [vmem:[%s228 + $0x350] sm:$0xff]
        %v385 = vld [vmem:[%s228 + $0x358] sm:$0xff]
        %v386 = vld [vmem:[%s228 + $0x360] sm:$0xff]
        %v387 = vld [vmem:[%s228 + $0x368] sm:$0xff]
        %v388 = vld [vmem:[%s228 + $0x370] sm:$0xff]
        %v389 = vld [vmem:[%s228 + $0x378] sm:$0xff]
        %v390 = vld [vmem:[%s228 + $0x380] sm:$0xff]
        %v391 = vld [vmem:[%s228 + $0x388] sm:$0xff]
        %v392 = vld [vmem:[%s228 + $0x390] sm:$0xff]
        %v393 = vld [vmem:[%s228 + $0x398] sm:$0xff]
        %v394 = vld [vmem:[%s228 + $0x3a0] sm:$0xff]
        %v395 = vld [vmem:[%s228 + $0x3a8] sm:$0xff]
        %v396 = vld [vmem:[%s228 + $0x3b0] sm:$0xff]
        %v397 = vld [vmem:[%s228 + $0x3b8] sm:$0xff]
        %v398 = vld [vmem:[%s228 + $0x3c0] sm:$0xff]
        %v399 = vld [vmem:[%s228 + $0x3c8] sm:$0xff]
        %v400 = vld [vmem:[%s228 + $0x3d0] sm:$0xff]
        %v401 = vld [vmem:[%s228 + $0x3d8] sm:$0xff]
        %v402 = vld [vmem:[%s228 + $0x3e0] sm:$0xff]
        %v403 = vld [vmem:[%s228 + $0x3e8] sm:$0xff]
        %v404 = vld [vmem:[%s228 + $0x3f0] sm:$0xff]
        %v405 = vld [vmem:[%s228 + $0x3f8] sm:$0xff]
        %v406 = vld [vmem:[%s228 + $0x400] sm:$0xff]
        %v407 = vld [vmem:[%s228 + $0x408] sm:$0xff]
        %v408 = vld [vmem:[%s228 + $0x410] sm:$0xff]
        %v409 = vld [vmem:[%s228 + $0x418] sm:$0xff]
        %v410 = vld [vmem:[%s228 + $0x420] sm:$0xff]
        %v411 = vld [vmem:[%s228 + $0x428] sm:$0xff]
        %v412 = vld [vmem:[%s228 + $0x430] sm:$0xff]
        %v413 = vld [vmem:[%s228 + $0x438] sm:$0xff]
        %v414 = vld [vmem:[%s228 + $0x440] sm:$0xff]
        %v415 = vld [vmem:[%s228 + $0x448] sm:$0xff]
        %v416 = vld [vmem:[%s228 + $0x450] sm:$0xff]
        %v417 = vld [vmem:[%s228 + $0x458] sm:$0xff]
        %v418 = vld [vmem:[%s228 + $0x460] sm:$0xff]
        %v419 = vld [vmem:[%s228 + $0x468] sm:$0xff]
        %v420 = vld [vmem:[%s228 + $0x470] sm:$0xff]
        %v421 = vld [vmem:[%s228 + $0x478] sm:$0xff]
        %v422 = vld [vmem:[%s228 + $0x480] sm:$0xff]
        %v423 = vld [vmem:[%s228 + $0x488] sm:$0xff]
        %v424 = vld [vmem:[%s228 + $0x490] sm:$0xff]
        %v425 = vld [vmem:[%s228 + $0x498] sm:$0xff]
        %v426 = vld [vmem:[%s228 + $0x4a0] sm:$0xff]
        %v427 = vld [vmem:[%s228 + $0x4a8] sm:$0xff]
        %v428 = vld [vmem:[%s228 + $0x4b0] sm:$0xff]
        %v429 = vld [vmem:[%s228 + $0x4b8] sm:$0xff]
        %v430 = vld [vmem:[%s228 + $0x4c0] sm:$0xff]
        %v431 = vld [vmem:[%s228 + $0x4c8] sm:$0xff]
        %v432 = vld [vmem:[%s228 + $0x4d0] sm:$0xff]
        %v433 = vld [vmem:[%s228 + $0x4d8] sm:$0xff]
        %v434 = vld [vmem:[%s228 + $0x4e0] sm:$0xff]
        %v435 = vld [vmem:[%s228 + $0x4e8] sm:$0xff]
        %v436 = vld [vmem:[%s228 + $0x4f0] sm:$0xff]
        %v437 = vld [vmem:[%s228 + $0x4f8] sm:$0xff]
        %v438 = vld [vmem:[%s228 + $0x500] sm:$0xff]
        %v439 = vld [vmem:[%s228 + $0x508] sm:$0xff]
        %v440 = vld [vmem:[%s228 + $0x510] sm:$0xff]
        %v441 = vld [vmem:[%s228 + $0x518] sm:$0xff]
        %v442 = vld [vmem:[%s228 + $0x520] sm:$0xff]
        %v443 = vld [vmem:[%s228 + $0x528] sm:$0xff]
        %v444 = vld [vmem:[%s228 + $0x530] sm:$0xff]
        %v445 = vld [vmem:[%s228 + $0x538] sm:$0xff]
        %v446 = vld [vmem:[%s228 + $0x540] sm:$0xff]
        %v447 = vld [vmem:[%s228 + $0x548] sm:$0xff]
        %v448 = vld [vmem:[%s228 + $0x550] sm:$0xff]
        %v449 = vld [vmem:[%s228 + $0x558] sm:$0xff]
        %v450 = vld [vmem:[%s228 + $0x560] sm:$0xff]
        %v451 = vld [vmem:[%s228 + $0x568] sm:$0xff]
        %v452 = vld [vmem:[%s228 + $0x570] sm:$0xff]
        %v453 = vld [vmem:[%s228 + $0x578] sm:$0xff]
        %v454 = vld [vmem:[%s228 + $0x580] sm:$0xff]
        %v455 = vld [vmem:[%s228 + $0x588] sm:$0xff]
        %v456 = vld [vmem:[%s228 + $0x590] sm:$0xff]
        %v457 = vld [vmem:[%s228 + $0x598] sm:$0xff]
        %v458 = vld [vmem:[%s228 + $0x5a0] sm:$0xff]
        %v459 = vld [vmem:[%s228 + $0x5a8] sm:$0xff]
        %v460 = vld [vmem:[%s228 + $0x5b0] sm:$0xff]
        %v461 = vld [vmem:[%s228 + $0x5b8] sm:$0xff]
        %v462 = vld [vmem:[%s228 + $0x5c0] sm:$0xff]
        %v463 = vld [vmem:[%s228 + $0x5c8] sm:$0xff]
        %v464 = vld [vmem:[%s228 + $0x5d0] sm:$0xff]
        %v465 = vld [vmem:[%s228 + $0x5d8] sm:$0xff]
        %v466 = vld [vmem:[%s228 + $0x5e0] sm:$0xff]
        %v467 = vld [vmem:[%s228 + $0x5e8] sm:$0xff]
        %v468 = vld [vmem:[%s228 + $0x5f0] sm:$0xff]
        %v469 = vld [vmem:[%s228 + $0x5f8] sm:$0xff]
        %v470 = vld [vmem:[%s228 + $0x600] sm:$0xff]
        %v471 = vld [vmem:[%s228 + $0x608] sm:$0xff]
        %v472 = vld [vmem:[%s228 + $0x610] sm:$0xff]
        %v473 = vld [vmem:[%s228 + $0x618] sm:$0xff]
        %v474 = vld [vmem:[%s228 + $0x620] sm:$0xff]
        %v475 = vld [vmem:[%s228 + $0x628] sm:$0xff]
        %v476 = vld [vmem:[%s228 + $0x630] sm:$0xff]
        %v477 = vld [vmem:[%s228 + $0x638] sm:$0xff]
        %v478 = vld [vmem:[%s228 + $0x640] sm:$0xff]
        %v479 = vld [vmem:[%s228 + $0x648] sm:$0xff]
        %v480 = vld [vmem:[%s228 + $0x650] sm:$0xff]
        %v481 = vld [vmem:[%s228 + $0x658] sm:$0xff]
        %v482 = vld [vmem:[%s228 + $0x660] sm:$0xff]
        %v483 = vld [vmem:[%s228 + $0x668] sm:$0xff]
        %v484 = vld [vmem:[%s228 + $0x670] sm:$0xff]
        %v485 = vld [vmem:[%s228 + $0x678] sm:$0xff]
        %v486 = vld [vmem:[%s228 + $0x680] sm:$0xff]
        %v487 = vld [vmem:[%s228 + $0x688] sm:$0xff]
        %v488 = vld [vmem:[%s228 + $0x690] sm:$0xff]
        %v489 = vld [vmem:[%s228 + $0x698] sm:$0xff]
        %v490 = vld [vmem:[%s228 + $0x6a0] sm:$0xff]
        %v491 = vld [vmem:[%s228 + $0x6a8] sm:$0xff]
        %v492 = vld [vmem:[%s228 + $0x6b0] sm:$0xff]
        %v493 = vld [vmem:[%s228 + $0x6b8] sm:$0xff]
        %v494 = vld [vmem:[%s228 + $0x6c0] sm:$0xff]
        %v495 = vld [vmem:[%s228 + $0x6c8] sm:$0xff]
        %v496 = vld [vmem:[%s228 + $0x6d0] sm:$0xff]
        %v497 = vld [vmem:[%s228 + $0x6d8] sm:$0xff]
        %v498 = vld [vmem:[%s228 + $0x6e0] sm:$0xff]
        %v499 = vld [vmem:[%s228 + $0x6e8] sm:$0xff]
        %v500 = vld [vmem:[%s228 + $0x6f0] sm:$0xff]
        %v501 = vld [vmem:[%s228 + $0x6f8] sm:$0xff]
        %v502 = vld [vmem:[%s228 + $0x700] sm:$0xff]
        %v503 = vld [vmem:[%s228 + $0x708] sm:$0xff]
        %v504 = vld [vmem:[%s228 + $0x710] sm:$0xff]
        %v505 = vld [vmem:[%s228 + $0x718] sm:$0xff]
        %v506 = vld [vmem:[%s228 + $0x720] sm:$0xff]
        %v507 = vld [vmem:[%s228 + $0x728] sm:$0xff]
        %v508 = vld [vmem:[%s228 + $0x730] sm:$0xff]
        %v509 = vld [vmem:[%s228 + $0x738] sm:$0xff]
        %v510 = vld [vmem:[%s228 + $0x740] sm:$0xff]
        %v511 = vld [vmem:[%s228 + $0x748] sm:$0xff]
        %v512 = vld [vmem:[%s228 + $0x750] sm:$0xff]
        %v513 = vld [vmem:[%s228 + $0x758] sm:$0xff]
        %v514 = vld [vmem:[%s228 + $0x760] sm:$0xff]
        %v515 = vld [vmem:[%s228 + $0x768] sm:$0xff]
        %v516 = vld [vmem:[%s228 + $0x770] sm:$0xff]
        %v517 = vld [vmem:[%s228 + $0x778] sm:$0xff]
        %v518 = vld [vmem:[%s228 + $0x780] sm:$0xff]
        %v519 = vld [vmem:[%s228 + $0x788] sm:$0xff]
        %v520 = vld [vmem:[%s228 + $0x790] sm:$0xff]
        %v521 = vld [vmem:[%s228 + $0x798] sm:$0xff]
        %v522 = vld [vmem:[%s228 + $0x7a0] sm:$0xff]
        %v523 = vld [vmem:[%s228 + $0x7a8] sm:$0xff]
        %v524 = vld [vmem:[%s228 + $0x7b0] sm:$0xff]
        %v525 = vld [vmem:[%s228 + $0x7b8] sm:$0xff]
        %v526 = vld [vmem:[%s228 + $0x7c0] sm:$0xff]
        %v527 = vld [vmem:[%s228 + $0x7c8] sm:$0xff]
        %v528 = vld [vmem:[%s228 + $0x7d0] sm:$0xff]
        %v529 = vld [vmem:[%s228 + $0x7d8] sm:$0xff]
        %v530 = vld [vmem:[%s228 + $0x7e0] sm:$0xff]
        %v531 = vld [vmem:[%s228 + $0x7e8] sm:$0xff]
        %v532 = vld [vmem:[%s228 + $0x7f0] sm:$0xff]
        %v533 = vld [vmem:[%s228 + $0x7f8] sm:$0xff]
        %v534 = vld [vmem:[%s228 + $0x800] sm:$0xff]
        %v535 = vld [vmem:[%s228 + $0x808] sm:$0xff]
        %v536 = vld [vmem:[%s228 + $0x810] sm:$0xff]
        %v537 = vld [vmem:[%s228 + $0x818] sm:$0xff]
        %v538 = vld [vmem:[%s228 + $0x820] sm:$0xff]
        %v539 = vld [vmem:[%s228 + $0x828] sm:$0xff]
        %v540 = vld [vmem:[%s228 + $0x830] sm:$0xff]
        %v541 = vld [vmem:[%s228 + $0x838] sm:$0xff]
        %v542 = vld [vmem:[%s228 + $0x840] sm:$0xff]
        %v543 = vld [vmem:[%s228 + $0x848] sm:$0xff]
        %v544 = vld [vmem:[%s228 + $0x850] sm:$0xff]
        %v545 = vld [vmem:[%s228 + $0x858] sm:$0xff]
        %v546 = vld [vmem:[%s228 + $0x860] sm:$0xff]
        %v547 = vld [vmem:[%s228 + $0x868] sm:$0xff]
        %v548 = vld [vmem:[%s228 + $0x870] sm:$0xff]
        %v549 = vld [vmem:[%s228 + $0x878] sm:$0xff]
        %v550 = vld [vmem:[%s228 + $0x880] sm:$0xff]
        %v551 = vld [vmem:[%s228 + $0x888] sm:$0xff]
        %v552 = vld [vmem:[%s228 + $0x890] sm:$0xff]
        %v553 = vld [vmem:[%s228 + $0x898] sm:$0xff]
        %v554 = vld [vmem:[%s228 + $0x8a0] sm:$0xff]
        %v555 = vld [vmem:[%s228 + $0x8a8] sm:$0xff]
        %v556 = vld [vmem:[%s228 + $0x8b0] sm:$0xff]
        %v557 = vld [vmem:[%s228 + $0x8b8] sm:$0xff]
        %v558 = vld [vmem:[%s228 + $0x8c0] sm:$0xff]
        %v559 = vld [vmem:[%s228 + $0x8c8] sm:$0xff]
        %v560 = vld [vmem:[%s228 + $0x8d0] sm:$0xff]
        %v561 = vld [vmem:[%s228 + $0x8d8] sm:$0xff]
        %v562 = vld [vmem:[%s228 + $0x8e0] sm:$0xff]
        %v563 = vld [vmem:[%s228 + $0x8e8] sm:$0xff]
        %v564 = vld [vmem:[%s228 + $0x8f0] sm:$0xff]
        %v565 = vld [vmem:[%s228 + $0x8f8] sm:$0xff]
        %v566 = vld [vmem:[%s228 + $0x900] sm:$0xff]
        %v567 = vld [vmem:[%s228 + $0x908] sm:$0xff]
        %v568 = vld [vmem:[%s228 + $0x910] sm:$0xff]
        %v569 = vld [vmem:[%s228 + $0x918] sm:$0xff]
        %v570 = vld [vmem:[%s228 + $0x920] sm:$0xff]
        %v571 = vld [vmem:[%s228 + $0x928] sm:$0xff]
        %v572 = vld [vmem:[%s228 + $0x930] sm:$0xff]
        %v573 = vld [vmem:[%s228 + $0x938] sm:$0xff]
        %v574 = vld [vmem:[%s228 + $0x940] sm:$0xff]
        %v575 = vld [vmem:[%s228 + $0x948] sm:$0xff]
        %v576 = vld [vmem:[%s228 + $0x950] sm:$0xff]
        %v577 = vld [vmem:[%s228 + $0x958] sm:$0xff]
        %v578 = vld [vmem:[%s228 + $0x960] sm:$0xff]
        %v579 = vld [vmem:[%s228 + $0x968] sm:$0xff]
        %v580 = vld [vmem:[%s228 + $0x970] sm:$0xff]
        %v581 = vld [vmem:[%s228 + $0x978] sm:$0xff]
        %v582 = vld [vmem:[%s228 + $0x980] sm:$0xff]
        %v583 = vld [vmem:[%s228 + $0x988] sm:$0xff]
        %v584 = vld [vmem:[%s228 + $0x990] sm:$0xff]
        %v585 = vld [vmem:[%s228 + $0x998] sm:$0xff]
        %v586 = vld [vmem:[%s228 + $0x9a0] sm:$0xff]
        %v587 = vld [vmem:[%s228 + $0x9a8] sm:$0xff]
        %v588 = vld [vmem:[%s228 + $0x9b0] sm:$0xff]
        %v589 = vld [vmem:[%s228 + $0x9b8] sm:$0xff]
        %v590 = vld [vmem:[%s228 + $0x9c0] sm:$0xff]
        %v591 = vld [vmem:[%s228 + $0x9c8] sm:$0xff]
        %v592 = vld [vmem:[%s228 + $0x9d0] sm:$0xff]
        %v593 = vld [vmem:[%s228 + $0x9d8] sm:$0xff]
        %v594 = vld [vmem:[%s228 + $0x9e0] sm:$0xff]
        %v595 = vld [vmem:[%s228 + $0x9e8] sm:$0xff]
        %v596 = vld [vmem:[%s228 + $0x9f0] sm:$0xff]
        %v597 = vld [vmem:[%s228 + $0x9f8] sm:$0xff]
        %v598 = vld [vmem:[%s228 + $0xa00] sm:$0xff]
        %v599 = vld [vmem:[%s228 + $0xa08] sm:$0xff]
        %v600 = vld [vmem:[%s228 + $0xa10] sm:$0xff]
        %v601 = vld [vmem:[%s228 + $0xa18] sm:$0xff]
        %v602 = vld [vmem:[%s228 + $0xa20] sm:$0xff]
        %v603 = vld [vmem:[%s228 + $0xa28] sm:$0xff]
        %v604 = vld [vmem:[%s228 + $0xa30] sm:$0xff]
        %v605 = vld [vmem:[%s228 + $0xa38] sm:$0xff]
        %v606 = vld [vmem:[%s228 + $0xa40] sm:$0xff]
        %v607 = vld [vmem:[%s228 + $0xa48] sm:$0xff]
        %v608 = vld [vmem:[%s228 + $0xa50] sm:$0xff]
        %v609 = vld [vmem:[%s228 + $0xa58] sm:$0xff]
        %v610 = vld [vmem:[%s228 + $0xa60] sm:$0xff]
        %v611 = vld [vmem:[%s228 + $0xa68] sm:$0xff]
        %v612 = vld [vmem:[%s228 + $0xa70] sm:$0xff]
        %v613 = vld [vmem:[%s228 + $0xa78] sm:$0xff]
        %v614 = vld [vmem:[%s228 + $0xa80] sm:$0xff]
        %v615 = vld [vmem:[%s228 + $0xa88] sm:$0xff]
        %v616 = vld [vmem:[%s228 + $0xa90] sm:$0xff]
        %v617 = vld [vmem:[%s228 + $0xa98] sm:$0xff]
        %v618 = vld [vmem:[%s228 + $0xaa0] sm:$0xff]
        %v619 = vld [vmem:[%s228 + $0xaa8] sm:$0xff]
        %v620 = vld [vmem:[%s228 + $0xab0] sm:$0xff]
        %v621 = vld [vmem:[%s228 + $0xab8] sm:$0xff]
        %v622 = vld [vmem:[%s228 + $0xac0] sm:$0xff]
        %v623 = vld [vmem:[%s228 + $0xac8] sm:$0xff]
        %v624 = vld [vmem:[%s228 + $0xad0] sm:$0xff]
        %v625 = vld [vmem:[%s228 + $0xad8] sm:$0xff]
        %v626 = vld [vmem:[%s228 + $0xae0] sm:$0xff]
        %v627 = vld [vmem:[%s228 + $0xae8] sm:$0xff]
        %v628 = vld [vmem:[%s228 + $0xaf0] sm:$0xff]
        %v629 = vld [vmem:[%s228 + $0xaf8] sm:$0xff]
        %v630 = vld [vmem:[%s228 + $0xb00] sm:$0xff]
        %v631 = vld [vmem:[%s228 + $0xb08] sm:$0xff]
        %v632 = vld [vmem:[%s228 + $0xb10] sm:$0xff]
        %v633 = vld [vmem:[%s228 + $0xb18] sm:$0xff]
        %v634 = vld [vmem:[%s228 + $0xb20] sm:$0xff]
        %v635 = vld [vmem:[%s228 + $0xb28] sm:$0xff]
        %v636 = vld [vmem:[%s228 + $0xb30] sm:$0xff]
        %v637 = vld [vmem:[%s228 + $0xb38] sm:$0xff]
        %v638 = vld [vmem:[%s228 + $0xb40] sm:$0xff]
        %v639 = vld [vmem:[%s228 + $0xb48] sm:$0xff]
        %v640 = vld [vmem:[%s228 + $0xb50] sm:$0xff]
        %v641 = vld [vmem:[%s228 + $0xb58] sm:$0xff]
        %v642 = vld [vmem:[%s228 + $0xb60] sm:$0xff]
        %v643 = vld [vmem:[%s228 + $0xb68] sm:$0xff]
        %v644 = vld [vmem:[%s228 + $0xb70] sm:$0xff]
        %v645 = vld [vmem:[%s228 + $0xb78] sm:$0xff]
        %v646 = vld [vmem:[%s228 + $0xb80] sm:$0xff]
        %v647 = vld [vmem:[%s228 + $0xb88] sm:$0xff]
        %v648 = vld [vmem:[%s228 + $0xb90] sm:$0xff]
        %v649 = vld [vmem:[%s228 + $0xb98] sm:$0xff]
        %v650 = vld [vmem:[%s228 + $0xba0] sm:$0xff]
        %v651 = vld [vmem:[%s228 + $0xba8] sm:$0xff]
        %v652 = vld [vmem:[%s228 + $0xbb0] sm:$0xff]
        %v653 = vld [vmem:[%s228 + $0xbb8] sm:$0xff]
        %v654 = vld [vmem:[%s228 + $0xbc0] sm:$0xff]
        %v655 = vld [vmem:[%s228 + $0xbc8] sm:$0xff]
        %v656 = vld [vmem:[%s228 + $0xbd0] sm:$0xff]
        %v657 = vld [vmem:[%s228 + $0xbd8] sm:$0xff]
        %v658 = vld [vmem:[%s228 + $0xbe0] sm:$0xff]
        %v659 = vld [vmem:[%s228 + $0xbe8] sm:$0xff]
        %v660 = vld [vmem:[%s228 + $0xbf0] sm:$0xff]
        %v661 = vld [vmem:[%s228 + $0xbf8] sm:$0xff]
        %v662 = vld [vmem:[%s238] sm:$0xff]
        %v664 = vperm.slane %v662, 0
        %v665 = vperm.slane %v662, 1
        %v666 = vperm.slane %v662, 2
        %v667 = vperm.slane %v662, 3
        %v668 = vperm.slane %v662, 4
        %v669 = vperm.slane %v662, 5
        %v670 = vperm.slane %v662, 6
        %v671 = vperm.slane %v662, 7
        %v686 = vunpack.c.l.b16 %v272
        %v687 = vunpack.c.h.b16 %v272
        %v688 = vunpack.c.l.b16 %v273
        %v689 = vunpack.c.h.b16 %v273
        %v690 = vunpack.c.l.b16 %v274
        %v691 = vunpack.c.h.b16 %v274
        %v692 = vunpack.c.l.b16 %v275
        %v693 = vunpack.c.h.b16 %v275
        %v694 = vunpack.c.l.b16 %v276
        %v695 = vunpack.c.h.b16 %v276
        %v696 = vunpack.c.l.b16 %v277
        %v697 = vunpack.c.h.b16 %v277
        %v698 = vpack.c.b16 %v692, %v686
        %v699 = vpack.c.b16 %v693, %v687
        %v700 = vpack.c.b16 %v694, %v688
        %v701 = vpack.c.b16 %v695, %v689
        %v702 = vpack.c.b16 %v696, %v690
        %v703 = vpack.c.b16 %v697, %v691
        %v1094 = vunpack.c.l.b16 %v278
        %v1095 = vunpack.c.h.b16 %v278
        %v1096 = vunpack.c.l.b16 %v279
        %v1097 = vunpack.c.h.b16 %v279
        %v1098 = vunpack.c.l.b16 %v280
        %v1099 = vunpack.c.h.b16 %v280
        %v1100 = vunpack.c.l.b16 %v281
        %v1101 = vunpack.c.h.b16 %v281
        %v1102 = vunpack.c.l.b16 %v282
        %v1103 = vunpack.c.h.b16 %v282
        %v1104 = vunpack.c.l.b16 %v283
        %v1105 = vunpack.c.h.b16 %v283
        %v1106 = vunpack.c.l.b16 %v284
        %v1107 = vunpack.c.h.b16 %v284
        %v1108 = vunpack.c.l.b16 %v285
        %v1109 = vunpack.c.h.b16 %v285
        %v1110 = vunpack.c.l.b16 %v286
        %v1111 = vunpack.c.h.b16 %v286
        %v1112 = vunpack.c.l.b16 %v287
        %v1113 = vunpack.c.h.b16 %v287
        %v1114 = vunpack.c.l.b16 %v288
        %v1115 = vunpack.c.h.b16 %v288
        %v1116 = vunpack.c.l.b16 %v289
        %v1117 = vunpack.c.h.b16 %v289
        %v1118 = vunpack.c.l.b16 %v290
        %v1119 = vunpack.c.h.b16 %v290
        %v1120 = vunpack.c.l.b16 %v291
        %v1121 = vunpack.c.h.b16 %v291
        %v1122 = vunpack.c.l.b16 %v292
        %v1123 = vunpack.c.h.b16 %v292
        %v1124 = vunpack.c.l.b16 %v293
        %v1125 = vunpack.c.h.b16 %v293
        %v1126 = vunpack.c.l.b16 %v294
        %v1127 = vunpack.c.h.b16 %v294
        %v1128 = vunpack.c.l.b16 %v295
        %v1129 = vunpack.c.h.b16 %v295
        %v1130 = vunpack.c.l.b16 %v296
        %v1131 = vunpack.c.h.b16 %v296
        %v1132 = vunpack.c.l.b16 %v297
        %v1133 = vunpack.c.h.b16 %v297
        %v1134 = vunpack.c.l.b16 %v298
        %v1135 = vunpack.c.h.b16 %v298
        %v1136 = vunpack.c.l.b16 %v299
        %v1137 = vunpack.c.h.b16 %v299
        %v1138 = vunpack.c.l.b16 %v300
        %v1139 = vunpack.c.h.b16 %v300
        %v1140 = vunpack.c.l.b16 %v301
        %v1141 = vunpack.c.h.b16 %v301
        %v1142 = vunpack.c.l.b16 %v302
        %v1143 = vunpack.c.h.b16 %v302
        %v1144 = vunpack.c.l.b16 %v303
        %v1145 = vunpack.c.h.b16 %v303
        %v1146 = vunpack.c.l.b16 %v304
        %v1147 = vunpack.c.h.b16 %v304
        %v1148 = vunpack.c.l.b16 %v305
        %v1149 = vunpack.c.h.b16 %v305
        %v1150 = vunpack.c.l.b16 %v306
        %v1151 = vunpack.c.h.b16 %v306
        %v1152 = vunpack.c.l.b16 %v307
        %v1153 = vunpack.c.h.b16 %v307
        %v1154 = vunpack.c.l.b16 %v308
        %v1155 = vunpack.c.h.b16 %v308
        %v1156 = vunpack.c.l.b16 %v309
        %v1157 = vunpack.c.h.b16 %v309
        %v1158 = vunpack.c.l.b16 %v310
        %v1159 = vunpack.c.h.b16 %v310
        %v1160 = vunpack.c.l.b16 %v311
        %v1161 = vunpack.c.h.b16 %v311
        %v1162 = vunpack.c.l.b16 %v312
        %v1163 = vunpack.c.h.b16 %v312
        %v1164 = vunpack.c.l.b16 %v313
        %v1165 = vunpack.c.h.b16 %v313
        %v1166 = vunpack.c.l.b16 %v314
        %v1167 = vunpack.c.h.b16 %v314
        %v1168 = vunpack.c.l.b16 %v315
        %v1169 = vunpack.c.h.b16 %v315
        %v1170 = vunpack.c.l.b16 %v316
        %v1171 = vunpack.c.h.b16 %v316
        %v1172 = vunpack.c.l.b16 %v317
        %v1173 = vunpack.c.h.b16 %v317
        %v1174 = vunpack.c.l.b16 %v318
        %v1175 = vunpack.c.h.b16 %v318
        %v1176 = vunpack.c.l.b16 %v319
        %v1177 = vunpack.c.h.b16 %v319
        %v1178 = vunpack.c.l.b16 %v320
        %v1179 = vunpack.c.h.b16 %v320
        %v1180 = vunpack.c.l.b16 %v321
        %v1181 = vunpack.c.h.b16 %v321
        %v1182 = vunpack.c.l.b16 %v322
        %v1183 = vunpack.c.h.b16 %v322
        %v1184 = vunpack.c.l.b16 %v323
        %v1185 = vunpack.c.h.b16 %v323
        %v1186 = vunpack.c.l.b16 %v324
        %v1187 = vunpack.c.h.b16 %v324
        %v1188 = vunpack.c.l.b16 %v325
        %v1189 = vunpack.c.h.b16 %v325
        %v1190 = vunpack.c.l.b16 %v326
        %v1191 = vunpack.c.h.b16 %v326
        %v1192 = vunpack.c.l.b16 %v327
        %v1193 = vunpack.c.h.b16 %v327
        %v1194 = vunpack.c.l.b16 %v328
        %v1195 = vunpack.c.h.b16 %v328
        %v1196 = vunpack.c.l.b16 %v329
        %v1197 = vunpack.c.h.b16 %v329
        %v1198 = vunpack.c.l.b16 %v330
        %v1199 = vunpack.c.h.b16 %v330
        %v1200 = vunpack.c.l.b16 %v331
        %v1201 = vunpack.c.h.b16 %v331
        %v1202 = vunpack.c.l.b16 %v332
        %v1203 = vunpack.c.h.b16 %v332
        %v1204 = vunpack.c.l.b16 %v333
        %v1205 = vunpack.c.h.b16 %v333
        %v1206 = vunpack.c.l.b16 %v334
        %v1207 = vunpack.c.h.b16 %v334
        %v1208 = vunpack.c.l.b16 %v335
        %v1209 = vunpack.c.h.b16 %v335
        %v1210 = vunpack.c.l.b16 %v336
        %v1211 = vunpack.c.h.b16 %v336
        %v1212 = vunpack.c.l.b16 %v337
        %v1213 = vunpack.c.h.b16 %v337
        %v1214 = vunpack.c.l.b16 %v338
        %v1215 = vunpack.c.h.b16 %v338
        %v1216 = vunpack.c.l.b16 %v339
        %v1217 = vunpack.c.h.b16 %v339
        %v1218 = vunpack.c.l.b16 %v340
        %v1219 = vunpack.c.h.b16 %v340
        %v1220 = vunpack.c.l.b16 %v341
        %v1221 = vunpack.c.h.b16 %v341
        %v1222 = vunpack.c.l.b16 %v342
        %v1223 = vunpack.c.h.b16 %v342
        %v1224 = vunpack.c.l.b16 %v343
        %v1225 = vunpack.c.h.b16 %v343
        %v1226 = vunpack.c.l.b16 %v344
        %v1227 = vunpack.c.h.b16 %v344
        %v1228 = vunpack.c.l.b16 %v345
        %v1229 = vunpack.c.h.b16 %v345
        %v1230 = vunpack.c.l.b16 %v346
        %v1231 = vunpack.c.h.b16 %v346
        %v1232 = vunpack.c.l.b16 %v347
        %v1233 = vunpack.c.h.b16 %v347
        %v1234 = vunpack.c.l.b16 %v348
        %v1235 = vunpack.c.h.b16 %v348
        %v1236 = vunpack.c.l.b16 %v349
        %v1237 = vunpack.c.h.b16 %v349
        %v1238 = vunpack.c.l.b16 %v350
        %v1239 = vunpack.c.h.b16 %v350
        %v1240 = vunpack.c.l.b16 %v351
        %v1241 = vunpack.c.h.b16 %v351
        %v1242 = vunpack.c.l.b16 %v352
        %v1243 = vunpack.c.h.b16 %v352
        %v1244 = vunpack.c.l.b16 %v353
        %v1245 = vunpack.c.h.b16 %v353
        %v1246 = vunpack.c.l.b16 %v354
        %v1247 = vunpack.c.h.b16 %v354
        %v1248 = vunpack.c.l.b16 %v355
        %v1249 = vunpack.c.h.b16 %v355
        %v1250 = vunpack.c.l.b16 %v356
        %v1251 = vunpack.c.h.b16 %v356
        %v1252 = vunpack.c.l.b16 %v357
        %v1253 = vunpack.c.h.b16 %v357
        %v1254 = vunpack.c.l.b16 %v358
        %v1255 = vunpack.c.h.b16 %v358
        %v1256 = vunpack.c.l.b16 %v359
        %v1257 = vunpack.c.h.b16 %v359
        %v1258 = vunpack.c.l.b16 %v360
        %v1259 = vunpack.c.h.b16 %v360
        %v1260 = vunpack.c.l.b16 %v361
        %v1261 = vunpack.c.h.b16 %v361
        %v1262 = vunpack.c.l.b16 %v362
        %v1263 = vunpack.c.h.b16 %v362
        %v1264 = vunpack.c.l.b16 %v363
        %v1265 = vunpack.c.h.b16 %v363
        %v1266 = vunpack.c.l.b16 %v364
        %v1267 = vunpack.c.h.b16 %v364
        %v1268 = vunpack.c.l.b16 %v365
        %v1269 = vunpack.c.h.b16 %v365
        %v1270 = vunpack.c.l.b16 %v366
        %v1271 = vunpack.c.h.b16 %v366
        %v1272 = vunpack.c.l.b16 %v367
        %v1273 = vunpack.c.h.b16 %v367
        %v1274 = vunpack.c.l.b16 %v368
        %v1275 = vunpack.c.h.b16 %v368
        %v1276 = vunpack.c.l.b16 %v369
        %v1277 = vunpack.c.h.b16 %v369
        %v1278 = vunpack.c.l.b16 %v370
        %v1279 = vunpack.c.h.b16 %v370
        %v1280 = vunpack.c.l.b16 %v371
        %v1281 = vunpack.c.h.b16 %v371
        %v1282 = vunpack.c.l.b16 %v372
        %v1283 = vunpack.c.h.b16 %v372
        %v1284 = vunpack.c.l.b16 %v373
        %v1285 = vunpack.c.h.b16 %v373
        %v1286 = vunpack.c.l.b16 %v374
        %v1287 = vunpack.c.h.b16 %v374
        %v1288 = vunpack.c.l.b16 %v375
        %v1289 = vunpack.c.h.b16 %v375
        %v1290 = vunpack.c.l.b16 %v376
        %v1291 = vunpack.c.h.b16 %v376
        %v1292 = vunpack.c.l.b16 %v377
        %v1293 = vunpack.c.h.b16 %v377
        %v1294 = vunpack.c.l.b16 %v378
        %v1295 = vunpack.c.h.b16 %v378
        %v1296 = vunpack.c.l.b16 %v379
        %v1297 = vunpack.c.h.b16 %v379
        %v1298 = vunpack.c.l.b16 %v380
        %v1299 = vunpack.c.h.b16 %v380
        %v1300 = vunpack.c.l.b16 %v381
        %v1301 = vunpack.c.h.b16 %v381
        %v1302 = vunpack.c.l.b16 %v382
        %v1303 = vunpack.c.h.b16 %v382
        %v1304 = vunpack.c.l.b16 %v383
        %v1305 = vunpack.c.h.b16 %v383
        %v1306 = vunpack.c.l.b16 %v384
        %v1307 = vunpack.c.h.b16 %v384
        %v1308 = vunpack.c.l.b16 %v385
        %v1309 = vunpack.c.h.b16 %v385
        %v1310 = vunpack.c.l.b16 %v386
        %v1311 = vunpack.c.h.b16 %v386
        %v1312 = vunpack.c.l.b16 %v387
        %v1313 = vunpack.c.h.b16 %v387
        %v1314 = vunpack.c.l.b16 %v388
        %v1315 = vunpack.c.h.b16 %v388
        %v1316 = vunpack.c.l.b16 %v389
        %v1317 = vunpack.c.h.b16 %v389
        %v1318 = vunpack.c.l.b16 %v390
        %v1319 = vunpack.c.h.b16 %v390
        %v1320 = vunpack.c.l.b16 %v391
        %v1321 = vunpack.c.h.b16 %v391
        %v1322 = vunpack.c.l.b16 %v392
        %v1323 = vunpack.c.h.b16 %v392
        %v1324 = vunpack.c.l.b16 %v393
        %v1325 = vunpack.c.h.b16 %v393
        %v1326 = vunpack.c.l.b16 %v394
        %v1327 = vunpack.c.h.b16 %v394
        %v1328 = vunpack.c.l.b16 %v395
        %v1329 = vunpack.c.h.b16 %v395
        %v1330 = vunpack.c.l.b16 %v396
        %v1331 = vunpack.c.h.b16 %v396
        %v1332 = vunpack.c.l.b16 %v397
        %v1333 = vunpack.c.h.b16 %v397
        %v1334 = vunpack.c.l.b16 %v398
        %v1335 = vunpack.c.h.b16 %v398
        %v1336 = vunpack.c.l.b16 %v399
        %v1337 = vunpack.c.h.b16 %v399
        %v1338 = vunpack.c.l.b16 %v400
        %v1339 = vunpack.c.h.b16 %v400
        %v1340 = vunpack.c.l.b16 %v401
        %v1341 = vunpack.c.h.b16 %v401
        %v1342 = vunpack.c.l.b16 %v402
        %v1343 = vunpack.c.h.b16 %v402
        %v1344 = vunpack.c.l.b16 %v403
        %v1345 = vunpack.c.h.b16 %v403
        %v1346 = vunpack.c.l.b16 %v404
        %v1347 = vunpack.c.h.b16 %v404
        %v1348 = vunpack.c.l.b16 %v405
        %v1349 = vunpack.c.h.b16 %v405
        %v1350 = vunpack.c.l.b16 %v406
        %v1351 = vunpack.c.h.b16 %v406
        %v1352 = vunpack.c.l.b16 %v407
        %v1353 = vunpack.c.h.b16 %v407
        %v1354 = vunpack.c.l.b16 %v408
        %v1355 = vunpack.c.h.b16 %v408
        %v1356 = vunpack.c.l.b16 %v409
        %v1357 = vunpack.c.h.b16 %v409
        %v1358 = vunpack.c.l.b16 %v410
        %v1359 = vunpack.c.h.b16 %v410
        %v1360 = vunpack.c.l.b16 %v411
        %v1361 = vunpack.c.h.b16 %v411
        %v1362 = vunpack.c.l.b16 %v412
        %v1363 = vunpack.c.h.b16 %v412
        %v1364 = vunpack.c.l.b16 %v413
        %v1365 = vunpack.c.h.b16 %v413
        %v1366 = vunpack.c.l.b16 %v414
        %v1367 = vunpack.c.h.b16 %v414
        %v1368 = vunpack.c.l.b16 %v415
        %v1369 = vunpack.c.h.b16 %v415
        %v1370 = vunpack.c.l.b16 %v416
        %v1371 = vunpack.c.h.b16 %v416
        %v1372 = vunpack.c.l.b16 %v417
        %v1373 = vunpack.c.h.b16 %v417
        %v1374 = vunpack.c.l.b16 %v418
        %v1375 = vunpack.c.h.b16 %v418
        %v1376 = vunpack.c.l.b16 %v419
        %v1377 = vunpack.c.h.b16 %v419
        %v1378 = vunpack.c.l.b16 %v420
        %v1379 = vunpack.c.h.b16 %v420
        %v1380 = vunpack.c.l.b16 %v421
        %v1381 = vunpack.c.h.b16 %v421
        %v1382 = vunpack.c.l.b16 %v422
        %v1383 = vunpack.c.h.b16 %v422
        %v1384 = vunpack.c.l.b16 %v423
        %v1385 = vunpack.c.h.b16 %v423
        %v1386 = vunpack.c.l.b16 %v424
        %v1387 = vunpack.c.h.b16 %v424
        %v1388 = vunpack.c.l.b16 %v425
        %v1389 = vunpack.c.h.b16 %v425
        %v1390 = vunpack.c.l.b16 %v426
        %v1391 = vunpack.c.h.b16 %v426
        %v1392 = vunpack.c.l.b16 %v427
        %v1393 = vunpack.c.h.b16 %v427
        %v1394 = vunpack.c.l.b16 %v428
        %v1395 = vunpack.c.h.b16 %v428
        %v1396 = vunpack.c.l.b16 %v429
        %v1397 = vunpack.c.h.b16 %v429
        %v1398 = vunpack.c.l.b16 %v430
        %v1399 = vunpack.c.h.b16 %v430
        %v1400 = vunpack.c.l.b16 %v431
        %v1401 = vunpack.c.h.b16 %v431
        %v1402 = vunpack.c.l.b16 %v432
        %v1403 = vunpack.c.h.b16 %v432
        %v1404 = vunpack.c.l.b16 %v433
        %v1405 = vunpack.c.h.b16 %v433
        %v1406 = vunpack.c.l.b16 %v434
        %v1407 = vunpack.c.h.b16 %v434
        %v1408 = vunpack.c.l.b16 %v435
        %v1409 = vunpack.c.h.b16 %v435
        %v1410 = vunpack.c.l.b16 %v436
        %v1411 = vunpack.c.h.b16 %v436
        %v1412 = vunpack.c.l.b16 %v437
        %v1413 = vunpack.c.h.b16 %v437
        %v1414 = vunpack.c.l.b16 %v438
        %v1415 = vunpack.c.h.b16 %v438
        %v1416 = vunpack.c.l.b16 %v439
        %v1417 = vunpack.c.h.b16 %v439
        %v1418 = vunpack.c.l.b16 %v440
        %v1419 = vunpack.c.h.b16 %v440
        %v1420 = vunpack.c.l.b16 %v441
        %v1421 = vunpack.c.h.b16 %v441
        %v1422 = vunpack.c.l.b16 %v442
        %v1423 = vunpack.c.h.b16 %v442
        %v1424 = vunpack.c.l.b16 %v443
        %v1425 = vunpack.c.h.b16 %v443
        %v1426 = vunpack.c.l.b16 %v444
        %v1427 = vunpack.c.h.b16 %v444
        %v1428 = vunpack.c.l.b16 %v445
        %v1429 = vunpack.c.h.b16 %v445
        %v1430 = vunpack.c.l.b16 %v446
        %v1431 = vunpack.c.h.b16 %v446
        %v1432 = vunpack.c.l.b16 %v447
        %v1433 = vunpack.c.h.b16 %v447
        %v1434 = vunpack.c.l.b16 %v448
        %v1435 = vunpack.c.h.b16 %v448
        %v1436 = vunpack.c.l.b16 %v449
        %v1437 = vunpack.c.h.b16 %v449
        %v1438 = vunpack.c.l.b16 %v450
        %v1439 = vunpack.c.h.b16 %v450
        %v1440 = vunpack.c.l.b16 %v451
        %v1441 = vunpack.c.h.b16 %v451
        %v1442 = vunpack.c.l.b16 %v452
        %v1443 = vunpack.c.h.b16 %v452
        %v1444 = vunpack.c.l.b16 %v453
        %v1445 = vunpack.c.h.b16 %v453
        %v1446 = vunpack.c.l.b16 %v454
        %v1447 = vunpack.c.h.b16 %v454
        %v1448 = vunpack.c.l.b16 %v455
        %v1449 = vunpack.c.h.b16 %v455
        %v1450 = vunpack.c.l.b16 %v456
        %v1451 = vunpack.c.h.b16 %v456
        %v1452 = vunpack.c.l.b16 %v457
        %v1453 = vunpack.c.h.b16 %v457
        %v1454 = vunpack.c.l.b16 %v458
        %v1455 = vunpack.c.h.b16 %v458
        %v1456 = vunpack.c.l.b16 %v459
        %v1457 = vunpack.c.h.b16 %v459
        %v1458 = vunpack.c.l.b16 %v460
        %v1459 = vunpack.c.h.b16 %v460
        %v1460 = vunpack.c.l.b16 %v461
        %v1461 = vunpack.c.h.b16 %v461
        %v1462 = vunpack.c.l.b16 %v462
        %v1463 = vunpack.c.h.b16 %v462
        %v1464 = vunpack.c.l.b16 %v463
        %v1465 = vunpack.c.h.b16 %v463
        %v1466 = vunpack.c.l.b16 %v464
        %v1467 = vunpack.c.h.b16 %v464
        %v1468 = vunpack.c.l.b16 %v465
        %v1469 = vunpack.c.h.b16 %v465
        %v1470 = vunpack.c.l.b16 %v466
        %v1471 = vunpack.c.h.b16 %v466
        %v1472 = vunpack.c.l.b16 %v467
        %v1473 = vunpack.c.h.b16 %v467
        %v1474 = vunpack.c.l.b16 %v468
        %v1475 = vunpack.c.h.b16 %v468
        %v1476 = vunpack.c.l.b16 %v469
        %v1477 = vunpack.c.h.b16 %v469
        %v1478 = vunpack.c.l.b16 %v470
        %v1479 = vunpack.c.h.b16 %v470
        %v1480 = vunpack.c.l.b16 %v471
        %v1481 = vunpack.c.h.b16 %v471
        %v1482 = vunpack.c.l.b16 %v472
        %v1483 = vunpack.c.h.b16 %v472
        %v1484 = vunpack.c.l.b16 %v473
        %v1485 = vunpack.c.h.b16 %v473
        %v1486 = vunpack.c.l.b16 %v474
        %v1487 = vunpack.c.h.b16 %v474
        %v1488 = vunpack.c.l.b16 %v475
        %v1489 = vunpack.c.h.b16 %v475
        %v1490 = vunpack.c.l.b16 %v476
        %v1491 = vunpack.c.h.b16 %v476
        %v1492 = vunpack.c.l.b16 %v477
        %v1493 = vunpack.c.h.b16 %v477
        %v1494 = vunpack.c.l.b16 %v478
        %v1495 = vunpack.c.h.b16 %v478
        %v1496 = vunpack.c.l.b16 %v479
        %v1497 = vunpack.c.h.b16 %v479
        %v1498 = vunpack.c.l.b16 %v480
        %v1499 = vunpack.c.h.b16 %v480
        %v1500 = vunpack.c.l.b16 %v481
        %v1501 = vunpack.c.h.b16 %v481
        %v1502 = vunpack.c.l.b16 %v482
        %v1503 = vunpack.c.h.b16 %v482
        %v1504 = vunpack.c.l.b16 %v483
        %v1505 = vunpack.c.h.b16 %v483
        %v1506 = vunpack.c.l.b16 %v484
        %v1507 = vunpack.c.h.b16 %v484
        %v1508 = vunpack.c.l.b16 %v485
        %v1509 = vunpack.c.h.b16 %v485
        %v1510 = vunpack.c.l.b16 %v486
        %v1511 = vunpack.c.h.b16 %v486
        %v1512 = vunpack.c.l.b16 %v487
        %v1513 = vunpack.c.h.b16 %v487
        %v1514 = vunpack.c.l.b16 %v488
        %v1515 = vunpack.c.h.b16 %v488
        %v1516 = vunpack.c.l.b16 %v489
        %v1517 = vunpack.c.h.b16 %v489
        %v1518 = vunpack.c.l.b16 %v490
        %v1519 = vunpack.c.h.b16 %v490
        %v1520 = vunpack.c.l.b16 %v491
        %v1521 = vunpack.c.h.b16 %v491
        %v1522 = vunpack.c.l.b16 %v492
        %v1523 = vunpack.c.h.b16 %v492
        %v1524 = vunpack.c.l.b16 %v493
        %v1525 = vunpack.c.h.b16 %v493
        %v1526 = vunpack.c.l.b16 %v494
        %v1527 = vunpack.c.h.b16 %v494
        %v1528 = vunpack.c.l.b16 %v495
        %v1529 = vunpack.c.h.b16 %v495
        %v1530 = vunpack.c.l.b16 %v496
        %v1531 = vunpack.c.h.b16 %v496
        %v1532 = vunpack.c.l.b16 %v497
        %v1533 = vunpack.c.h.b16 %v497
        %v1534 = vunpack.c.l.b16 %v498
        %v1535 = vunpack.c.h.b16 %v498
        %v1536 = vunpack.c.l.b16 %v499
        %v1537 = vunpack.c.h.b16 %v499
        %v1538 = vunpack.c.l.b16 %v500
        %v1539 = vunpack.c.h.b16 %v500
        %v1540 = vunpack.c.l.b16 %v501
        %v1541 = vunpack.c.h.b16 %v501
        %v1542 = vunpack.c.l.b16 %v502
        %v1543 = vunpack.c.h.b16 %v502
        %v1544 = vunpack.c.l.b16 %v503
        %v1545 = vunpack.c.h.b16 %v503
        %v1546 = vunpack.c.l.b16 %v504
        %v1547 = vunpack.c.h.b16 %v504
        %v1548 = vunpack.c.l.b16 %v505
        %v1549 = vunpack.c.h.b16 %v505
        %v1550 = vunpack.c.l.b16 %v506
        %v1551 = vunpack.c.h.b16 %v506
        %v1552 = vunpack.c.l.b16 %v507
        %v1553 = vunpack.c.h.b16 %v507
        %v1554 = vunpack.c.l.b16 %v508
        %v1555 = vunpack.c.h.b16 %v508
        %v1556 = vunpack.c.l.b16 %v509
        %v1557 = vunpack.c.h.b16 %v509
        %v1558 = vunpack.c.l.b16 %v510
        %v1559 = vunpack.c.h.b16 %v510
        %v1560 = vunpack.c.l.b16 %v511
        %v1561 = vunpack.c.h.b16 %v511
        %v1562 = vunpack.c.l.b16 %v512
        %v1563 = vunpack.c.h.b16 %v512
        %v1564 = vunpack.c.l.b16 %v513
        %v1565 = vunpack.c.h.b16 %v513
        %v1566 = vunpack.c.l.b16 %v514
        %v1567 = vunpack.c.h.b16 %v514
        %v1568 = vunpack.c.l.b16 %v515
        %v1569 = vunpack.c.h.b16 %v515
        %v1570 = vunpack.c.l.b16 %v516
        %v1571 = vunpack.c.h.b16 %v516
        %v1572 = vunpack.c.l.b16 %v517
        %v1573 = vunpack.c.h.b16 %v517
        %v1574 = vunpack.c.l.b16 %v518
        %v1575 = vunpack.c.h.b16 %v518
        %v1576 = vunpack.c.l.b16 %v519
        %v1577 = vunpack.c.h.b16 %v519
        %v1578 = vunpack.c.l.b16 %v520
        %v1579 = vunpack.c.h.b16 %v520
        %v1580 = vunpack.c.l.b16 %v521
        %v1581 = vunpack.c.h.b16 %v521
        %v1582 = vunpack.c.l.b16 %v522
        %v1583 = vunpack.c.h.b16 %v522
        %v1584 = vunpack.c.l.b16 %v523
        %v1585 = vunpack.c.h.b16 %v523
        %v1586 = vunpack.c.l.b16 %v524
        %v1587 = vunpack.c.h.b16 %v524
        %v1588 = vunpack.c.l.b16 %v525
        %v1589 = vunpack.c.h.b16 %v525
        %v1590 = vunpack.c.l.b16 %v526
        %v1591 = vunpack.c.h.b16 %v526
        %v1592 = vunpack.c.l.b16 %v527
        %v1593 = vunpack.c.h.b16 %v527
        %v1594 = vunpack.c.l.b16 %v528
        %v1595 = vunpack.c.h.b16 %v528
        %v1596 = vunpack.c.l.b16 %v529
        %v1597 = vunpack.c.h.b16 %v529
        %v1598 = vunpack.c.l.b16 %v530
        %v1599 = vunpack.c.h.b16 %v530
        %v1600 = vunpack.c.l.b16 %v531
        %v1601 = vunpack.c.h.b16 %v531
        %v1602 = vunpack.c.l.b16 %v532
        %v1603 = vunpack.c.h.b16 %v532
        %v1604 = vunpack.c.l.b16 %v533
        %v1605 = vunpack.c.h.b16 %v533
        %v1606 = vunpack.c.l.b16 %v534
        %v1607 = vunpack.c.h.b16 %v534
        %v1608 = vunpack.c.l.b16 %v535
        %v1609 = vunpack.c.h.b16 %v535
        %v1610 = vunpack.c.l.b16 %v536
        %v1611 = vunpack.c.h.b16 %v536
        %v1612 = vunpack.c.l.b16 %v537
        %v1613 = vunpack.c.h.b16 %v537
        %v1614 = vunpack.c.l.b16 %v538
        %v1615 = vunpack.c.h.b16 %v538
        %v1616 = vunpack.c.l.b16 %v539
        %v1617 = vunpack.c.h.b16 %v539
        %v1618 = vunpack.c.l.b16 %v540
        %v1619 = vunpack.c.h.b16 %v540
        %v1620 = vunpack.c.l.b16 %v541
        %v1621 = vunpack.c.h.b16 %v541
        %v1622 = vunpack.c.l.b16 %v542
        %v1623 = vunpack.c.h.b16 %v542
        %v1624 = vunpack.c.l.b16 %v543
        %v1625 = vunpack.c.h.b16 %v543
        %v1626 = vunpack.c.l.b16 %v544
        %v1627 = vunpack.c.h.b16 %v544
        %v1628 = vunpack.c.l.b16 %v545
        %v1629 = vunpack.c.h.b16 %v545
        %v1630 = vunpack.c.l.b16 %v546
        %v1631 = vunpack.c.h.b16 %v546
        %v1632 = vunpack.c.l.b16 %v547
        %v1633 = vunpack.c.h.b16 %v547
        %v1634 = vunpack.c.l.b16 %v548
        %v1635 = vunpack.c.h.b16 %v548
        %v1636 = vunpack.c.l.b16 %v549
        %v1637 = vunpack.c.h.b16 %v549
        %v1638 = vunpack.c.l.b16 %v550
        %v1639 = vunpack.c.h.b16 %v550
        %v1640 = vunpack.c.l.b16 %v551
        %v1641 = vunpack.c.h.b16 %v551
        %v1642 = vunpack.c.l.b16 %v552
        %v1643 = vunpack.c.h.b16 %v552
        %v1644 = vunpack.c.l.b16 %v553
        %v1645 = vunpack.c.h.b16 %v553
        %v1646 = vunpack.c.l.b16 %v554
        %v1647 = vunpack.c.h.b16 %v554
        %v1648 = vunpack.c.l.b16 %v555
        %v1649 = vunpack.c.h.b16 %v555
        %v1650 = vunpack.c.l.b16 %v556
        %v1651 = vunpack.c.h.b16 %v556
        %v1652 = vunpack.c.l.b16 %v557
        %v1653 = vunpack.c.h.b16 %v557
        %v1654 = vunpack.c.l.b16 %v558
        %v1655 = vunpack.c.h.b16 %v558
        %v1656 = vunpack.c.l.b16 %v559
        %v1657 = vunpack.c.h.b16 %v559
        %v1658 = vunpack.c.l.b16 %v560
        %v1659 = vunpack.c.h.b16 %v560
        %v1660 = vunpack.c.l.b16 %v561
        %v1661 = vunpack.c.h.b16 %v561
        %v1662 = vunpack.c.l.b16 %v562
        %v1663 = vunpack.c.h.b16 %v562
        %v1664 = vunpack.c.l.b16 %v563
        %v1665 = vunpack.c.h.b16 %v563
        %v1666 = vunpack.c.l.b16 %v564
        %v1667 = vunpack.c.h.b16 %v564
        %v1668 = vunpack.c.l.b16 %v565
        %v1669 = vunpack.c.h.b16 %v565
        %v1670 = vunpack.c.l.b16 %v566
        %v1671 = vunpack.c.h.b16 %v566
        %v1672 = vunpack.c.l.b16 %v567
        %v1673 = vunpack.c.h.b16 %v567
        %v1674 = vunpack.c.l.b16 %v568
        %v1675 = vunpack.c.h.b16 %v568
        %v1676 = vunpack.c.l.b16 %v569
        %v1677 = vunpack.c.h.b16 %v569
        %v1678 = vunpack.c.l.b16 %v570
        %v1679 = vunpack.c.h.b16 %v570
        %v1680 = vunpack.c.l.b16 %v571
        %v1681 = vunpack.c.h.b16 %v571
        %v1682 = vunpack.c.l.b16 %v572
        %v1683 = vunpack.c.h.b16 %v572
        %v1684 = vunpack.c.l.b16 %v573
        %v1685 = vunpack.c.h.b16 %v573
        %v1686 = vunpack.c.l.b16 %v574
        %v1687 = vunpack.c.h.b16 %v574
        %v1688 = vunpack.c.l.b16 %v575
        %v1689 = vunpack.c.h.b16 %v575
        %v1690 = vunpack.c.l.b16 %v576
        %v1691 = vunpack.c.h.b16 %v576
        %v1692 = vunpack.c.l.b16 %v577
        %v1693 = vunpack.c.h.b16 %v577
        %v1694 = vunpack.c.l.b16 %v578
        %v1695 = vunpack.c.h.b16 %v578
        %v1696 = vunpack.c.l.b16 %v579
        %v1697 = vunpack.c.h.b16 %v579
        %v1698 = vunpack.c.l.b16 %v580
        %v1699 = vunpack.c.h.b16 %v580
        %v1700 = vunpack.c.l.b16 %v581
        %v1701 = vunpack.c.h.b16 %v581
        %v1702 = vunpack.c.l.b16 %v582
        %v1703 = vunpack.c.h.b16 %v582
        %v1704 = vunpack.c.l.b16 %v583
        %v1705 = vunpack.c.h.b16 %v583
        %v1706 = vunpack.c.l.b16 %v584
        %v1707 = vunpack.c.h.b16 %v584
        %v1708 = vunpack.c.l.b16 %v585
        %v1709 = vunpack.c.h.b16 %v585
        %v1710 = vunpack.c.l.b16 %v586
        %v1711 = vunpack.c.h.b16 %v586
        %v1712 = vunpack.c.l.b16 %v587
        %v1713 = vunpack.c.h.b16 %v587
        %v1714 = vunpack.c.l.b16 %v588
        %v1715 = vunpack.c.h.b16 %v588
        %v1716 = vunpack.c.l.b16 %v589
        %v1717 = vunpack.c.h.b16 %v589
        %v1718 = vunpack.c.l.b16 %v590
        %v1719 = vunpack.c.h.b16 %v590
        %v1720 = vunpack.c.l.b16 %v591
        %v1721 = vunpack.c.h.b16 %v591
        %v1722 = vunpack.c.l.b16 %v592
        %v1723 = vunpack.c.h.b16 %v592
        %v1724 = vunpack.c.l.b16 %v593
        %v1725 = vunpack.c.h.b16 %v593
        %v1726 = vunpack.c.l.b16 %v594
        %v1727 = vunpack.c.h.b16 %v594
        %v1728 = vunpack.c.l.b16 %v595
        %v1729 = vunpack.c.h.b16 %v595
        %v1730 = vunpack.c.l.b16 %v596
        %v1731 = vunpack.c.h.b16 %v596
        %v1732 = vunpack.c.l.b16 %v597
        %v1733 = vunpack.c.h.b16 %v597
        %v1734 = vunpack.c.l.b16 %v598
        %v1735 = vunpack.c.h.b16 %v598
        %v1736 = vunpack.c.l.b16 %v599
        %v1737 = vunpack.c.h.b16 %v599
        %v1738 = vunpack.c.l.b16 %v600
        %v1739 = vunpack.c.h.b16 %v600
        %v1740 = vunpack.c.l.b16 %v601
        %v1741 = vunpack.c.h.b16 %v601
        %v1742 = vunpack.c.l.b16 %v602
        %v1743 = vunpack.c.h.b16 %v602
        %v1744 = vunpack.c.l.b16 %v603
        %v1745 = vunpack.c.h.b16 %v603
        %v1746 = vunpack.c.l.b16 %v604
        %v1747 = vunpack.c.h.b16 %v604
        %v1748 = vunpack.c.l.b16 %v605
        %v1749 = vunpack.c.h.b16 %v605
        %v1750 = vunpack.c.l.b16 %v606
        %v1751 = vunpack.c.h.b16 %v606
        %v1752 = vunpack.c.l.b16 %v607
        %v1753 = vunpack.c.h.b16 %v607
        %v1754 = vunpack.c.l.b16 %v608
        %v1755 = vunpack.c.h.b16 %v608
        %v1756 = vunpack.c.l.b16 %v609
        %v1757 = vunpack.c.h.b16 %v609
        %v1758 = vunpack.c.l.b16 %v610
        %v1759 = vunpack.c.h.b16 %v610
        %v1760 = vunpack.c.l.b16 %v611
        %v1761 = vunpack.c.h.b16 %v611
        %v1762 = vunpack.c.l.b16 %v612
        %v1763 = vunpack.c.h.b16 %v612
        %v1764 = vunpack.c.l.b16 %v613
        %v1765 = vunpack.c.h.b16 %v613
        %v1766 = vunpack.c.l.b16 %v614
        %v1767 = vunpack.c.h.b16 %v614
        %v1768 = vunpack.c.l.b16 %v615
        %v1769 = vunpack.c.h.b16 %v615
        %v1770 = vunpack.c.l.b16 %v616
        %v1771 = vunpack.c.h.b16 %v616
        %v1772 = vunpack.c.l.b16 %v617
        %v1773 = vunpack.c.h.b16 %v617
        %v1774 = vunpack.c.l.b16 %v618
        %v1775 = vunpack.c.h.b16 %v618
        %v1776 = vunpack.c.l.b16 %v619
        %v1777 = vunpack.c.h.b16 %v619
        %v1778 = vunpack.c.l.b16 %v620
        %v1779 = vunpack.c.h.b16 %v620
        %v1780 = vunpack.c.l.b16 %v621
        %v1781 = vunpack.c.h.b16 %v621
        %v1782 = vunpack.c.l.b16 %v622
        %v1783 = vunpack.c.h.b16 %v622
        %v1784 = vunpack.c.l.b16 %v623
        %v1785 = vunpack.c.h.b16 %v623
        %v1786 = vunpack.c.l.b16 %v624
        %v1787 = vunpack.c.h.b16 %v624
        %v1788 = vunpack.c.l.b16 %v625
        %v1789 = vunpack.c.h.b16 %v625
        %v1790 = vunpack.c.l.b16 %v626
        %v1791 = vunpack.c.h.b16 %v626
        %v1792 = vunpack.c.l.b16 %v627
        %v1793 = vunpack.c.h.b16 %v627
        %v1794 = vunpack.c.l.b16 %v628
        %v1795 = vunpack.c.h.b16 %v628
        %v1796 = vunpack.c.l.b16 %v629
        %v1797 = vunpack.c.h.b16 %v629
        %v1798 = vunpack.c.l.b16 %v630
        %v1799 = vunpack.c.h.b16 %v630
        %v1800 = vunpack.c.l.b16 %v631
        %v1801 = vunpack.c.h.b16 %v631
        %v1802 = vunpack.c.l.b16 %v632
        %v1803 = vunpack.c.h.b16 %v632
        %v1804 = vunpack.c.l.b16 %v633
        %v1805 = vunpack.c.h.b16 %v633
        %v1806 = vunpack.c.l.b16 %v634
        %v1807 = vunpack.c.h.b16 %v634
        %v1808 = vunpack.c.l.b16 %v635
        %v1809 = vunpack.c.h.b16 %v635
        %v1810 = vunpack.c.l.b16 %v636
        %v1811 = vunpack.c.h.b16 %v636
        %v1812 = vunpack.c.l.b16 %v637
        %v1813 = vunpack.c.h.b16 %v637
        %v1814 = vunpack.c.l.b16 %v638
        %v1815 = vunpack.c.h.b16 %v638
        %v1816 = vunpack.c.l.b16 %v639
        %v1817 = vunpack.c.h.b16 %v639
        %v1818 = vunpack.c.l.b16 %v640
        %v1819 = vunpack.c.h.b16 %v640
        %v1820 = vunpack.c.l.b16 %v641
        %v1821 = vunpack.c.h.b16 %v641
        %v1822 = vunpack.c.l.b16 %v642
        %v1823 = vunpack.c.h.b16 %v642
        %v1824 = vunpack.c.l.b16 %v643
        %v1825 = vunpack.c.h.b16 %v643
        %v1826 = vunpack.c.l.b16 %v644
        %v1827 = vunpack.c.h.b16 %v644
        %v1828 = vunpack.c.l.b16 %v645
        %v1829 = vunpack.c.h.b16 %v645
        %v1830 = vunpack.c.l.b16 %v646
        %v1831 = vunpack.c.h.b16 %v646
        %v1832 = vunpack.c.l.b16 %v647
        %v1833 = vunpack.c.h.b16 %v647
        %v1834 = vunpack.c.l.b16 %v648
        %v1835 = vunpack.c.h.b16 %v648
        %v1836 = vunpack.c.l.b16 %v649
        %v1837 = vunpack.c.h.b16 %v649
        %v1838 = vunpack.c.l.b16 %v650
        %v1839 = vunpack.c.h.b16 %v650
        %v1840 = vunpack.c.l.b16 %v651
        %v1841 = vunpack.c.h.b16 %v651
        %v1842 = vunpack.c.l.b16 %v652
        %v1843 = vunpack.c.h.b16 %v652
        %v1844 = vunpack.c.l.b16 %v653
        %v1845 = vunpack.c.h.b16 %v653
        %v1846 = vunpack.c.l.b16 %v654
        %v1847 = vunpack.c.h.b16 %v654
        %v1848 = vunpack.c.l.b16 %v655
        %v1849 = vunpack.c.h.b16 %v655
        %v1850 = vunpack.c.l.b16 %v656
        %v1851 = vunpack.c.h.b16 %v656
        %v1852 = vunpack.c.l.b16 %v657
        %v1853 = vunpack.c.h.b16 %v657
        %v1854 = vunpack.c.l.b16 %v658
        %v1855 = vunpack.c.h.b16 %v658
        %v1856 = vunpack.c.l.b16 %v659
        %v1857 = vunpack.c.h.b16 %v659
        %v1858 = vunpack.c.l.b16 %v660
        %v1859 = vunpack.c.h.b16 %v660
        %v1860 = vunpack.c.l.b16 %v661
        %v1861 = vunpack.c.h.b16 %v661
        %v1862 = vpack.c.b16 %v1102, %v1094
        %v1863 = vpack.c.b16 %v1103, %v1095
        %v1864 = vpack.c.b16 %v1104, %v1096
        %v1865 = vpack.c.b16 %v1105, %v1097
        %v1866 = vpack.c.b16 %v1106, %v1098
        %v1867 = vpack.c.b16 %v1107, %v1099
        %v1868 = vpack.c.b16 %v1108, %v1100
        %v1869 = vpack.c.b16 %v1109, %v1101
        %v1870 = vpack.c.b16 %v1118, %v1110
        %v1871 = vpack.c.b16 %v1119, %v1111
        %v1872 = vpack.c.b16 %v1120, %v1112
        %v1873 = vpack.c.b16 %v1121, %v1113
        %v1874 = vpack.c.b16 %v1122, %v1114
        %v1875 = vpack.c.b16 %v1123, %v1115
        %v1876 = vpack.c.b16 %v1124, %v1116
        %v1877 = vpack.c.b16 %v1125, %v1117
        %v1878 = vpack.c.b16 %v1134, %v1126
        %v1879 = vpack.c.b16 %v1135, %v1127
        %v1880 = vpack.c.b16 %v1136, %v1128
        %v1881 = vpack.c.b16 %v1137, %v1129
        %v1882 = vpack.c.b16 %v1138, %v1130
        %v1883 = vpack.c.b16 %v1139, %v1131
        %v1884 = vpack.c.b16 %v1140, %v1132
        %v1885 = vpack.c.b16 %v1141, %v1133
        %v1886 = vpack.c.b16 %v1150, %v1142
        %v1887 = vpack.c.b16 %v1151, %v1143
        %v1888 = vpack.c.b16 %v1152, %v1144
        %v1889 = vpack.c.b16 %v1153, %v1145
        %v1890 = vpack.c.b16 %v1154, %v1146
        %v1891 = vpack.c.b16 %v1155, %v1147
        %v1892 = vpack.c.b16 %v1156, %v1148
        %v1893 = vpack.c.b16 %v1157, %v1149
        %v1894 = vpack.c.b16 %v1166, %v1158
        %v1895 = vpack.c.b16 %v1167, %v1159
        %v1896 = vpack.c.b16 %v1168, %v1160
        %v1897 = vpack.c.b16 %v1169, %v1161
        %v1898 = vpack.c.b16 %v1170, %v1162
        %v1899 = vpack.c.b16 %v1171, %v1163
        %v1900 = vpack.c.b16 %v1172, %v1164
        %v1901 = vpack.c.b16 %v1173, %v1165
        %v1902 = vpack.c.b16 %v1182, %v1174
        %v1903 = vpack.c.b16 %v1183, %v1175
        %v1904 = vpack.c.b16 %v1184, %v1176
        %v1905 = vpack.c.b16 %v1185, %v1177
        %v1906 = vpack.c.b16 %v1186, %v1178
        %v1907 = vpack.c.b16 %v1187, %v1179
        %v1908 = vpack.c.b16 %v1188, %v1180
        %v1909 = vpack.c.b16 %v1189, %v1181
        %v1910 = vpack.c.b16 %v1198, %v1190
        %v1911 = vpack.c.b16 %v1199, %v1191
        %v1912 = vpack.c.b16 %v1200, %v1192
        %v1913 = vpack.c.b16 %v1201, %v1193
        %v1914 = vpack.c.b16 %v1202, %v1194
        %v1915 = vpack.c.b16 %v1203, %v1195
        %v1916 = vpack.c.b16 %v1204, %v1196
        %v1917 = vpack.c.b16 %v1205, %v1197
        %v1918 = vpack.c.b16 %v1214, %v1206
        %v1919 = vpack.c.b16 %v1215, %v1207
        %v1920 = vpack.c.b16 %v1216, %v1208
        %v1921 = vpack.c.b16 %v1217, %v1209
        %v1922 = vpack.c.b16 %v1218, %v1210
        %v1923 = vpack.c.b16 %v1219, %v1211
        %v1924 = vpack.c.b16 %v1220, %v1212
        %v1925 = vpack.c.b16 %v1221, %v1213
        %v1926 = vpack.c.b16 %v1230, %v1222
        %v1927 = vpack.c.b16 %v1231, %v1223
        %v1928 = vpack.c.b16 %v1232, %v1224
        %v1929 = vpack.c.b16 %v1233, %v1225
        %v1930 = vpack.c.b16 %v1234, %v1226
        %v1931 = vpack.c.b16 %v1235, %v1227
        %v1932 = vpack.c.b16 %v1236, %v1228
        %v1933 = vpack.c.b16 %v1237, %v1229
        %v1934 = vpack.c.b16 %v1246, %v1238
        %v1935 = vpack.c.b16 %v1247, %v1239
        %v1936 = vpack.c.b16 %v1248, %v1240
        %v1937 = vpack.c.b16 %v1249, %v1241
        %v1938 = vpack.c.b16 %v1250, %v1242
        %v1939 = vpack.c.b16 %v1251, %v1243
        %v1940 = vpack.c.b16 %v1252, %v1244
        %v1941 = vpack.c.b16 %v1253, %v1245
        %v1942 = vpack.c.b16 %v1262, %v1254
        %v1943 = vpack.c.b16 %v1263, %v1255
        %v1944 = vpack.c.b16 %v1264, %v1256
        %v1945 = vpack.c.b16 %v1265, %v1257
        %v1946 = vpack.c.b16 %v1266, %v1258
        %v1947 = vpack.c.b16 %v1267, %v1259
        %v1948 = vpack.c.b16 %v1268, %v1260
        %v1949 = vpack.c.b16 %v1269, %v1261
        %v1950 = vpack.c.b16 %v1278, %v1270
        %v1951 = vpack.c.b16 %v1279, %v1271
        %v1952 = vpack.c.b16 %v1280, %v1272
        %v1953 = vpack.c.b16 %v1281, %v1273
        %v1954 = vpack.c.b16 %v1282, %v1274
        %v1955 = vpack.c.b16 %v1283, %v1275
        %v1956 = vpack.c.b16 %v1284, %v1276
        %v1957 = vpack.c.b16 %v1285, %v1277
        %v1958 = vpack.c.b16 %v1294, %v1286
        %v1959 = vpack.c.b16 %v1295, %v1287
        %v1960 = vpack.c.b16 %v1296, %v1288
        %v1961 = vpack.c.b16 %v1297, %v1289
        %v1962 = vpack.c.b16 %v1298, %v1290
        %v1963 = vpack.c.b16 %v1299, %v1291
        %v1964 = vpack.c.b16 %v1300, %v1292
        %v1965 = vpack.c.b16 %v1301, %v1293
        %v1966 = vpack.c.b16 %v1310, %v1302
        %v1967 = vpack.c.b16 %v1311, %v1303
        %v1968 = vpack.c.b16 %v1312, %v1304
        %v1969 = vpack.c.b16 %v1313, %v1305
        %v1970 = vpack.c.b16 %v1314, %v1306
        %v1971 = vpack.c.b16 %v1315, %v1307
        %v1972 = vpack.c.b16 %v1316, %v1308
        %v1973 = vpack.c.b16 %v1317, %v1309
        %v1974 = vpack.c.b16 %v1326, %v1318
        %v1975 = vpack.c.b16 %v1327, %v1319
        %v1976 = vpack.c.b16 %v1328, %v1320
        %v1977 = vpack.c.b16 %v1329, %v1321
        %v1978 = vpack.c.b16 %v1330, %v1322
        %v1979 = vpack.c.b16 %v1331, %v1323
        %v1980 = vpack.c.b16 %v1332, %v1324
        %v1981 = vpack.c.b16 %v1333, %v1325
        %v1982 = vpack.c.b16 %v1342, %v1334
        %v1983 = vpack.c.b16 %v1343, %v1335
        %v1984 = vpack.c.b16 %v1344, %v1336
        %v1985 = vpack.c.b16 %v1345, %v1337
        %v1986 = vpack.c.b16 %v1346, %v1338
        %v1987 = vpack.c.b16 %v1347, %v1339
        %v1988 = vpack.c.b16 %v1348, %v1340
        %v1989 = vpack.c.b16 %v1349, %v1341
        %v1990 = vpack.c.b16 %v1358, %v1350
        %v1991 = vpack.c.b16 %v1359, %v1351
        %v1992 = vpack.c.b16 %v1360, %v1352
        %v1993 = vpack.c.b16 %v1361, %v1353
        %v1994 = vpack.c.b16 %v1362, %v1354
        %v1995 = vpack.c.b16 %v1363, %v1355
        %v1996 = vpack.c.b16 %v1364, %v1356
        %v1997 = vpack.c.b16 %v1365, %v1357
        %v1998 = vpack.c.b16 %v1374, %v1366
        %v1999 = vpack.c.b16 %v1375, %v1367
        %v2000 = vpack.c.b16 %v1376, %v1368
        %v2001 = vpack.c.b16 %v1377, %v1369
        %v2002 = vpack.c.b16 %v1378, %v1370
        %v2003 = vpack.c.b16 %v1379, %v1371
        %v2004 = vpack.c.b16 %v1380, %v1372
        %v2005 = vpack.c.b16 %v1381, %v1373
        %v2006 = vpack.c.b16 %v1390, %v1382
        %v2007 = vpack.c.b16 %v1391, %v1383
        %v2008 = vpack.c.b16 %v1392, %v1384
        %v2009 = vpack.c.b16 %v1393, %v1385
        %v2010 = vpack.c.b16 %v1394, %v1386
        %v2011 = vpack.c.b16 %v1395, %v1387
        %v2012 = vpack.c.b16 %v1396, %v1388
        %v2013 = vpack.c.b16 %v1397, %v1389
        %v2014 = vpack.c.b16 %v1406, %v1398
        %v2015 = vpack.c.b16 %v1407, %v1399
        %v2016 = vpack.c.b16 %v1408, %v1400
        %v2017 = vpack.c.b16 %v1409, %v1401
        %v2018 = vpack.c.b16 %v1410, %v1402
        %v2019 = vpack.c.b16 %v1411, %v1403
        %v2020 = vpack.c.b16 %v1412, %v1404
        %v2021 = vpack.c.b16 %v1413, %v1405
        %v2022 = vpack.c.b16 %v1422, %v1414
        %v2023 = vpack.c.b16 %v1423, %v1415
        %v2024 = vpack.c.b16 %v1424, %v1416
        %v2025 = vpack.c.b16 %v1425, %v1417
        %v2026 = vpack.c.b16 %v1426, %v1418
        %v2027 = vpack.c.b16 %v1427, %v1419
        %v2028 = vpack.c.b16 %v1428, %v1420
        %v2029 = vpack.c.b16 %v1429, %v1421
        %v2030 = vpack.c.b16 %v1438, %v1430
        %v2031 = vpack.c.b16 %v1439, %v1431
        %v2032 = vpack.c.b16 %v1440, %v1432
        %v2033 = vpack.c.b16 %v1441, %v1433
        %v2034 = vpack.c.b16 %v1442, %v1434
        %v2035 = vpack.c.b16 %v1443, %v1435
        %v2036 = vpack.c.b16 %v1444, %v1436
        %v2037 = vpack.c.b16 %v1445, %v1437
        %v2038 = vpack.c.b16 %v1454, %v1446
        %v2039 = vpack.c.b16 %v1455, %v1447
        %v2040 = vpack.c.b16 %v1456, %v1448
        %v2041 = vpack.c.b16 %v1457, %v1449
        %v2042 = vpack.c.b16 %v1458, %v1450
        %v2043 = vpack.c.b16 %v1459, %v1451
        %v2044 = vpack.c.b16 %v1460, %v1452
        %v2045 = vpack.c.b16 %v1461, %v1453
        %v2046 = vpack.c.b16 %v1470, %v1462
        %v2047 = vpack.c.b16 %v1471, %v1463
        %v2048 = vpack.c.b16 %v1472, %v1464
        %v2049 = vpack.c.b16 %v1473, %v1465
        %v2050 = vpack.c.b16 %v1474, %v1466
        %v2051 = vpack.c.b16 %v1475, %v1467
        %v2052 = vpack.c.b16 %v1476, %v1468
        %v2053 = vpack.c.b16 %v1477, %v1469
        %v2054 = vpack.c.b16 %v1486, %v1478
        %v2055 = vpack.c.b16 %v1487, %v1479
        %v2056 = vpack.c.b16 %v1488, %v1480
        %v2057 = vpack.c.b16 %v1489, %v1481
        %v2058 = vpack.c.b16 %v1490, %v1482
        %v2059 = vpack.c.b16 %v1491, %v1483
        %v2060 = vpack.c.b16 %v1492, %v1484
        %v2061 = vpack.c.b16 %v1493, %v1485
        %v2062 = vpack.c.b16 %v1502, %v1494
        %v2063 = vpack.c.b16 %v1503, %v1495
        %v2064 = vpack.c.b16 %v1504, %v1496
        %v2065 = vpack.c.b16 %v1505, %v1497
        %v2066 = vpack.c.b16 %v1506, %v1498
        %v2067 = vpack.c.b16 %v1507, %v1499
        %v2068 = vpack.c.b16 %v1508, %v1500
        %v2069 = vpack.c.b16 %v1509, %v1501
        %v2070 = vpack.c.b16 %v1518, %v1510
        %v2071 = vpack.c.b16 %v1519, %v1511
        %v2072 = vpack.c.b16 %v1520, %v1512
        %v2073 = vpack.c.b16 %v1521, %v1513
        %v2074 = vpack.c.b16 %v1522, %v1514
        %v2075 = vpack.c.b16 %v1523, %v1515
        %v2076 = vpack.c.b16 %v1524, %v1516
        %v2077 = vpack.c.b16 %v1525, %v1517
        %v2078 = vpack.c.b16 %v1534, %v1526
        %v2079 = vpack.c.b16 %v1535, %v1527
        %v2080 = vpack.c.b16 %v1536, %v1528
        %v2081 = vpack.c.b16 %v1537, %v1529
        %v2082 = vpack.c.b16 %v1538, %v1530
        %v2083 = vpack.c.b16 %v1539, %v1531
        %v2084 = vpack.c.b16 %v1540, %v1532
        %v2085 = vpack.c.b16 %v1541, %v1533
        %v2086 = vpack.c.b16 %v1550, %v1542
        %v2087 = vpack.c.b16 %v1551, %v1543
        %v2088 = vpack.c.b16 %v1552, %v1544
        %v2089 = vpack.c.b16 %v1553, %v1545
        %v2090 = vpack.c.b16 %v1554, %v1546
        %v2091 = vpack.c.b16 %v1555, %v1547
        %v2092 = vpack.c.b16 %v1556, %v1548
        %v2093 = vpack.c.b16 %v1557, %v1549
        %v2094 = vpack.c.b16 %v1566, %v1558
        %v2095 = vpack.c.b16 %v1567, %v1559
        %v2096 = vpack.c.b16 %v1568, %v1560
        %v2097 = vpack.c.b16 %v1569, %v1561
        %v2098 = vpack.c.b16 %v1570, %v1562
        %v2099 = vpack.c.b16 %v1571, %v1563
        %v2100 = vpack.c.b16 %v1572, %v1564
        %v2101 = vpack.c.b16 %v1573, %v1565
        %v2102 = vpack.c.b16 %v1582, %v1574
        %v2103 = vpack.c.b16 %v1583, %v1575
        %v2104 = vpack.c.b16 %v1584, %v1576
        %v2105 = vpack.c.b16 %v1585, %v1577
        %v2106 = vpack.c.b16 %v1586, %v1578
        %v2107 = vpack.c.b16 %v1587, %v1579
        %v2108 = vpack.c.b16 %v1588, %v1580
        %v2109 = vpack.c.b16 %v1589, %v1581
        %v2110 = vpack.c.b16 %v1598, %v1590
        %v2111 = vpack.c.b16 %v1599, %v1591
        %v2112 = vpack.c.b16 %v1600, %v1592
        %v2113 = vpack.c.b16 %v1601, %v1593
        %v2114 = vpack.c.b16 %v1602, %v1594
        %v2115 = vpack.c.b16 %v1603, %v1595
        %v2116 = vpack.c.b16 %v1604, %v1596
        %v2117 = vpack.c.b16 %v1605, %v1597
        %v2118 = vpack.c.b16 %v1614, %v1606
        %v2119 = vpack.c.b16 %v1615, %v1607
        %v2120 = vpack.c.b16 %v1616, %v1608
        %v2121 = vpack.c.b16 %v1617, %v1609
        %v2122 = vpack.c.b16 %v1618, %v1610
        %v2123 = vpack.c.b16 %v1619, %v1611
        %v2124 = vpack.c.b16 %v1620, %v1612
        %v2125 = vpack.c.b16 %v1621, %v1613
        %v2126 = vpack.c.b16 %v1630, %v1622
        %v2127 = vpack.c.b16 %v1631, %v1623
        %v2128 = vpack.c.b16 %v1632, %v1624
        %v2129 = vpack.c.b16 %v1633, %v1625
        %v2130 = vpack.c.b16 %v1634, %v1626
        %v2131 = vpack.c.b16 %v1635, %v1627
        %v2132 = vpack.c.b16 %v1636, %v1628
        %v2133 = vpack.c.b16 %v1637, %v1629
        %v2134 = vpack.c.b16 %v1646, %v1638
        %v2135 = vpack.c.b16 %v1647, %v1639
        %v2136 = vpack.c.b16 %v1648, %v1640
        %v2137 = vpack.c.b16 %v1649, %v1641
        %v2138 = vpack.c.b16 %v1650, %v1642
        %v2139 = vpack.c.b16 %v1651, %v1643
        %v2140 = vpack.c.b16 %v1652, %v1644
        %v2141 = vpack.c.b16 %v1653, %v1645
        %v2142 = vpack.c.b16 %v1662, %v1654
        %v2143 = vpack.c.b16 %v1663, %v1655
        %v2144 = vpack.c.b16 %v1664, %v1656
        %v2145 = vpack.c.b16 %v1665, %v1657
        %v2146 = vpack.c.b16 %v1666, %v1658
        %v2147 = vpack.c.b16 %v1667, %v1659
        %v2148 = vpack.c.b16 %v1668, %v1660
        %v2149 = vpack.c.b16 %v1669, %v1661
        %v2150 = vpack.c.b16 %v1678, %v1670
        %v2151 = vpack.c.b16 %v1679, %v1671
        %v2152 = vpack.c.b16 %v1680, %v1672
        %v2153 = vpack.c.b16 %v1681, %v1673
        %v2154 = vpack.c.b16 %v1682, %v1674
        %v2155 = vpack.c.b16 %v1683, %v1675
        %v2156 = vpack.c.b16 %v1684, %v1676
        %v2157 = vpack.c.b16 %v1685, %v1677
        %v2158 = vpack.c.b16 %v1694, %v1686
        %v2159 = vpack.c.b16 %v1695, %v1687
        %v2160 = vpack.c.b16 %v1696, %v1688
        %v2161 = vpack.c.b16 %v1697, %v1689
        %v2162 = vpack.c.b16 %v1698, %v1690
        %v2163 = vpack.c.b16 %v1699, %v1691
        %v2164 = vpack.c.b16 %v1700, %v1692
        %v2165 = vpack.c.b16 %v1701, %v1693
        %v2166 = vpack.c.b16 %v1710, %v1702
        %v2167 = vpack.c.b16 %v1711, %v1703
        %v2168 = vpack.c.b16 %v1712, %v1704
        %v2169 = vpack.c.b16 %v1713, %v1705
        %v2170 = vpack.c.b16 %v1714, %v1706
        %v2171 = vpack.c.b16 %v1715, %v1707
        %v2172 = vpack.c.b16 %v1716, %v1708
        %v2173 = vpack.c.b16 %v1717, %v1709
        %v2174 = vpack.c.b16 %v1726, %v1718
        %v2175 = vpack.c.b16 %v1727, %v1719
        %v2176 = vpack.c.b16 %v1728, %v1720
        %v2177 = vpack.c.b16 %v1729, %v1721
        %v2178 = vpack.c.b16 %v1730, %v1722
        %v2179 = vpack.c.b16 %v1731, %v1723
        %v2180 = vpack.c.b16 %v1732, %v1724
        %v2181 = vpack.c.b16 %v1733, %v1725
        %v2182 = vpack.c.b16 %v1742, %v1734
        %v2183 = vpack.c.b16 %v1743, %v1735
        %v2184 = vpack.c.b16 %v1744, %v1736
        %v2185 = vpack.c.b16 %v1745, %v1737
        %v2186 = vpack.c.b16 %v1746, %v1738
        %v2187 = vpack.c.b16 %v1747, %v1739
        %v2188 = vpack.c.b16 %v1748, %v1740
        %v2189 = vpack.c.b16 %v1749, %v1741
        %v2190 = vpack.c.b16 %v1758, %v1750
        %v2191 = vpack.c.b16 %v1759, %v1751
        %v2192 = vpack.c.b16 %v1760, %v1752
        %v2193 = vpack.c.b16 %v1761, %v1753
        %v2194 = vpack.c.b16 %v1762, %v1754
        %v2195 = vpack.c.b16 %v1763, %v1755
        %v2196 = vpack.c.b16 %v1764, %v1756
        %v2197 = vpack.c.b16 %v1765, %v1757
        %v2198 = vpack.c.b16 %v1774, %v1766
        %v2199 = vpack.c.b16 %v1775, %v1767
        %v2200 = vpack.c.b16 %v1776, %v1768
        %v2201 = vpack.c.b16 %v1777, %v1769
        %v2202 = vpack.c.b16 %v1778, %v1770
        %v2203 = vpack.c.b16 %v1779, %v1771
        %v2204 = vpack.c.b16 %v1780, %v1772
        %v2205 = vpack.c.b16 %v1781, %v1773
        %v2206 = vpack.c.b16 %v1790, %v1782
        %v2207 = vpack.c.b16 %v1791, %v1783
        %v2208 = vpack.c.b16 %v1792, %v1784
        %v2209 = vpack.c.b16 %v1793, %v1785
        %v2210 = vpack.c.b16 %v1794, %v1786
        %v2211 = vpack.c.b16 %v1795, %v1787
        %v2212 = vpack.c.b16 %v1796, %v1788
        %v2213 = vpack.c.b16 %v1797, %v1789
        %v2214 = vpack.c.b16 %v1806, %v1798
        %v2215 = vpack.c.b16 %v1807, %v1799
        %v2216 = vpack.c.b16 %v1808, %v1800
        %v2217 = vpack.c.b16 %v1809, %v1801
        %v2218 = vpack.c.b16 %v1810, %v1802
        %v2219 = vpack.c.b16 %v1811, %v1803
        %v2220 = vpack.c.b16 %v1812, %v1804
        %v2221 = vpack.c.b16 %v1813, %v1805
        %v2222 = vpack.c.b16 %v1822, %v1814
        %v2223 = vpack.c.b16 %v1823, %v1815
        %v2224 = vpack.c.b16 %v1824, %v1816
        %v2225 = vpack.c.b16 %v1825, %v1817
        %v2226 = vpack.c.b16 %v1826, %v1818
        %v2227 = vpack.c.b16 %v1827, %v1819
        %v2228 = vpack.c.b16 %v1828, %v1820
        %v2229 = vpack.c.b16 %v1829, %v1821
        %v2230 = vpack.c.b16 %v1838, %v1830
        %v2231 = vpack.c.b16 %v1839, %v1831
        %v2232 = vpack.c.b16 %v1840, %v1832
        %v2233 = vpack.c.b16 %v1841, %v1833
        %v2234 = vpack.c.b16 %v1842, %v1834
        %v2235 = vpack.c.b16 %v1843, %v1835
        %v2236 = vpack.c.b16 %v1844, %v1836
        %v2237 = vpack.c.b16 %v1845, %v1837
        %v2238 = vpack.c.b16 %v1854, %v1846
        %v2239 = vpack.c.b16 %v1855, %v1847
        %v2240 = vpack.c.b16 %v1856, %v1848
        %v2241 = vpack.c.b16 %v1857, %v1849
        %v2242 = vpack.c.b16 %v1858, %v1850
        %v2243 = vpack.c.b16 %v1859, %v1851
        %v2244 = vpack.c.b16 %v1860, %v1852
        %v2245 = vpack.c.b16 %v1861, %v1853
        %2630 = vmatpush.bf16.msra.mxu0 %v1918
        %2631 = vmatpush.bf16.msra.mxu0 %v1910
        %2632 = vmatpush.bf16.msra.mxu0 %v1902
        %2633 = vmatpush.bf16.msra.mxu0 %v1894
        %2634 = vmatpush.bf16.msra.mxu0 %v1886
        %2635 = vmatpush.bf16.msra.mxu0 %v1878
        %2636 = vmatpush.bf16.msra.mxu0 %v1870
        %2637 = vmatpush.bf16.msra.mxu0 %v1862
        %2638 = vmatmul.bf16.gmra.mxu0 %v698
        %v2639 = vpop.f32.mrf.mxu0
        %v2640 = vadd.f32 %v664, %v2639
        %v2641 = vpop.f32.mrf.mxu0
        %v2642 = vadd.f32 %v664, %v2641
        %2643 = vdwg.mxu0
        %2644 = vmatpush.bf16.msra.mxu0 %v1982
        %2645 = vmatpush.bf16.msra.mxu0 %v1974
        %2646 = vmatpush.bf16.msra.mxu0 %v1966
        %2647 = vmatpush.bf16.msra.mxu0 %v1958
        %2648 = vmatpush.bf16.msra.mxu0 %v1950
        %2649 = vmatpush.bf16.msra.mxu0 %v1942
        %2650 = vmatpush.bf16.msra.mxu0 %v1934
        %2651 = vmatpush.bf16.msra.mxu0 %v1926
        %2652 = vmatmul.bf16.gmra.mxu0 %v699
        %v2653 = vpop.f32.mrf.mxu0
        %v2654 = vadd.f32 %v2640, %v2653
        %v2655 = vpop.f32.mrf.mxu0
        %v2656 = vadd.f32 %v2642, %v2655
        %2657 = vdwg.mxu0
        %2658 = vmatpush.bf16.msra.mxu0 %v2046
        %2659 = vmatpush.bf16.msra.mxu0 %v2038
        %2660 = vmatpush.bf16.msra.mxu0 %v2030
        %2661 = vmatpush.bf16.msra.mxu0 %v2022
        %2662 = vmatpush.bf16.msra.mxu0 %v2014
        %2663 = vmatpush.bf16.msra.mxu0 %v2006
        %2664 = vmatpush.bf16.msra.mxu0 %v1998
        %2665 = vmatpush.bf16.msra.mxu0 %v1990
        %2666 = vmatmul.bf16.gmra.mxu0 %v700
        %v2667 = vpop.f32.mrf.mxu0
        %v2668 = vadd.f32 %v2654, %v2667
        %v2669 = vpop.f32.mrf.mxu0
        %v2670 = vadd.f32 %v2656, %v2669
        %2671 = vdwg.mxu0
        %2672 = vmatpush.bf16.msra.mxu0 %v2110
        %2673 = vmatpush.bf16.msra.mxu0 %v2102
        %2674 = vmatpush.bf16.msra.mxu0 %v2094
        %2675 = vmatpush.bf16.msra.mxu0 %v2086
        %2676 = vmatpush.bf16.msra.mxu0 %v2078
        %2677 = vmatpush.bf16.msra.mxu0 %v2070
        %2678 = vmatpush.bf16.msra.mxu0 %v2062
        %2679 = vmatpush.bf16.msra.mxu0 %v2054
        %2680 = vmatmul.bf16.gmra.mxu0 %v701
        %v2681 = vpop.f32.mrf.mxu0
        %v2682 = vadd.f32 %v2668, %v2681
        %v2683 = vpop.f32.mrf.mxu0
        %v2684 = vadd.f32 %v2670, %v2683
        %2685 = vdwg.mxu0
        %2686 = vmatpush.bf16.msra.mxu0 %v2174
        %2687 = vmatpush.bf16.msra.mxu0 %v2166
        %2688 = vmatpush.bf16.msra.mxu0 %v2158
        %2689 = vmatpush.bf16.msra.mxu0 %v2150
        %2690 = vmatpush.bf16.msra.mxu0 %v2142
        %2691 = vmatpush.bf16.msra.mxu0 %v2134
        %2692 = vmatpush.bf16.msra.mxu0 %v2126
        %2693 = vmatpush.bf16.msra.mxu0 %v2118
        %2694 = vmatmul.bf16.gmra.mxu0 %v702
        %v2695 = vpop.f32.mrf.mxu0
        %v2696 = vadd.f32 %v2682, %v2695
        %v2697 = vpop.f32.mrf.mxu0
        %v2698 = vadd.f32 %v2684, %v2697
        %2699 = vdwg.mxu0
        %2700 = vmatpush.bf16.msra.mxu0 %v2238
        %2701 = vmatpush.bf16.msra.mxu0 %v2230
        %2702 = vmatpush.bf16.msra.mxu0 %v2222
        %2703 = vmatpush.bf16.msra.mxu0 %v2214
        %2704 = vmatpush.bf16.msra.mxu0 %v2206
        %2705 = vmatpush.bf16.msra.mxu0 %v2198
        %2706 = vmatpush.bf16.msra.mxu0 %v2190
        %2707 = vmatpush.bf16.msra.mxu0 %v2182
        %2708 = vmatmul.bf16.gmra.mxu0 %v703
        %v2709 = vpop.f32.mrf.mxu0
        %v2710 = vadd.f32 %v2696, %v2709
        %v2711 = vpop.f32.mrf.mxu0
        %v2712 = vadd.f32 %v2698, %v2711
        %2713 = vdwg.mxu0
        %2714 = vmatpush.bf16.msra.mxu0 %v1919
        %2715 = vmatpush.bf16.msra.mxu0 %v1911
        %2716 = vmatpush.bf16.msra.mxu0 %v1903
        %2717 = vmatpush.bf16.msra.mxu0 %v1895
        %2718 = vmatpush.bf16.msra.mxu0 %v1887
        %2719 = vmatpush.bf16.msra.mxu0 %v1879
        %2720 = vmatpush.bf16.msra.mxu0 %v1871
        %2721 = vmatpush.bf16.msra.mxu0 %v1863
        %2722 = vmatmul.bf16.gmra.mxu0 %v698
        %v2723 = vpop.f32.mrf.mxu0
        %v2724 = vadd.f32 %v665, %v2723
        %v2725 = vpop.f32.mrf.mxu0
        %v2726 = vadd.f32 %v665, %v2725
        %2727 = vdwg.mxu0
        %2728 = vmatpush.bf16.msra.mxu0 %v1983
        %2729 = vmatpush.bf16.msra.mxu0 %v1975
        %2730 = vmatpush.bf16.msra.mxu0 %v1967
        %2731 = vmatpush.bf16.msra.mxu0 %v1959
        %2732 = vmatpush.bf16.msra.mxu0 %v1951
        %2733 = vmatpush.bf16.msra.mxu0 %v1943
        %2734 = vmatpush.bf16.msra.mxu0 %v1935
        %2735 = vmatpush.bf16.msra.mxu0 %v1927
        %2736 = vmatmul.bf16.gmra.mxu0 %v699
        %v2737 = vpop.f32.mrf.mxu0
        %v2738 = vadd.f32 %v2724, %v2737
        %v2739 = vpop.f32.mrf.mxu0
        %v2740 = vadd.f32 %v2726, %v2739
        %2741 = vdwg.mxu0
        %2742 = vmatpush.bf16.msra.mxu0 %v2047
        %2743 = vmatpush.bf16.msra.mxu0 %v2039
        %2744 = vmatpush.bf16.msra.mxu0 %v2031
        %2745 = vmatpush.bf16.msra.mxu0 %v2023
        %2746 = vmatpush.bf16.msra.mxu0 %v2015
        %2747 = vmatpush.bf16.msra.mxu0 %v2007
        %2748 = vmatpush.bf16.msra.mxu0 %v1999
        %2749 = vmatpush.bf16.msra.mxu0 %v1991
        %2750 = vmatmul.bf16.gmra.mxu0 %v700
        %v2751 = vpop.f32.mrf.mxu0
        %v2752 = vadd.f32 %v2738, %v2751
        %v2753 = vpop.f32.mrf.mxu0
        %v2754 = vadd.f32 %v2740, %v2753
        %2755 = vdwg.mxu0
        %2756 = vmatpush.bf16.msra.mxu0 %v2111
        %2757 = vmatpush.bf16.msra.mxu0 %v2103
        %2758 = vmatpush.bf16.msra.mxu0 %v2095
        %2759 = vmatpush.bf16.msra.mxu0 %v2087
        %2760 = vmatpush.bf16.msra.mxu0 %v2079
        %2761 = vmatpush.bf16.msra.mxu0 %v2071
        %2762 = vmatpush.bf16.msra.mxu0 %v2063
        %2763 = vmatpush.bf16.msra.mxu0 %v2055
        %2764 = vmatmul.bf16.gmra.mxu0 %v701
        %v2765 = vpop.f32.mrf.mxu0
        %v2766 = vadd.f32 %v2752, %v2765
        %v2767 = vpop.f32.mrf.mxu0
        %v2768 = vadd.f32 %v2754, %v2767
        %2769 = vdwg.mxu0
        %2770 = vmatpush.bf16.msra.mxu0 %v2175
        %2771 = vmatpush.bf16.msra.mxu0 %v2167
        %2772 = vmatpush.bf16.msra.mxu0 %v2159
        %2773 = vmatpush.bf16.msra.mxu0 %v2151
        %2774 = vmatpush.bf16.msra.mxu0 %v2143
        %2775 = vmatpush.bf16.msra.mxu0 %v2135
        %2776 = vmatpush.bf16.msra.mxu0 %v2127
        %2777 = vmatpush.bf16.msra.mxu0 %v2119
        %2778 = vmatmul.bf16.gmra.mxu0 %v702
        %v2779 = vpop.f32.mrf.mxu0
        %v2780 = vadd.f32 %v2766, %v2779
        %v2781 = vpop.f32.mrf.mxu0
        %v2782 = vadd.f32 %v2768, %v2781
        %2783 = vdwg.mxu0
        %2784 = vmatpush.bf16.msra.mxu0 %v2239
        %2785 = vmatpush.bf16.msra.mxu0 %v2231
        %2786 = vmatpush.bf16.msra.mxu0 %v2223
        %2787 = vmatpush.bf16.msra.mxu0 %v2215
        %2788 = vmatpush.bf16.msra.mxu0 %v2207
        %2789 = vmatpush.bf16.msra.mxu0 %v2199
        %2790 = vmatpush.bf16.msra.mxu0 %v2191
        %2791 = vmatpush.bf16.msra.mxu0 %v2183
        %2792 = vmatmul.bf16.gmra.mxu0 %v703
        %v2793 = vpop.f32.mrf.mxu0
        %v2794 = vadd.f32 %v2780, %v2793
        %v2795 = vpop.f32.mrf.mxu0
        %v2796 = vadd.f32 %v2782, %v2795
        %2797 = vdwg.mxu0
        %2798 = vmatpush.bf16.msra.mxu0 %v1920
        %2799 = vmatpush.bf16.msra.mxu0 %v1912
        %2800 = vmatpush.bf16.msra.mxu0 %v1904
        %2801 = vmatpush.bf16.msra.mxu0 %v1896
        %2802 = vmatpush.bf16.msra.mxu0 %v1888
        %2803 = vmatpush.bf16.msra.mxu0 %v1880
        %2804 = vmatpush.bf16.msra.mxu0 %v1872
        %2805 = vmatpush.bf16.msra.mxu0 %v1864
        %2806 = vmatmul.bf16.gmra.mxu0 %v698
        %v2807 = vpop.f32.mrf.mxu0
        %v2808 = vadd.f32 %v666, %v2807
        %v2809 = vpop.f32.mrf.mxu0
        %v2810 = vadd.f32 %v666, %v2809
        %2811 = vdwg.mxu0
        %2812 = vmatpush.bf16.msra.mxu0 %v1984
        %2813 = vmatpush.bf16.msra.mxu0 %v1976
        %2814 = vmatpush.bf16.msra.mxu0 %v1968
        %2815 = vmatpush.bf16.msra.mxu0 %v1960
        %2816 = vmatpush.bf16.msra.mxu0 %v1952
        %2817 = vmatpush.bf16.msra.mxu0 %v1944
        %2818 = vmatpush.bf16.msra.mxu0 %v1936
        %2819 = vmatpush.bf16.msra.mxu0 %v1928
        %2820 = vmatmul.bf16.gmra.mxu0 %v699
        %v2821 = vpop.f32.mrf.mxu0
        %v2822 = vadd.f32 %v2808, %v2821
        %v2823 = vpop.f32.mrf.mxu0
        %v2824 = vadd.f32 %v2810, %v2823
        %2825 = vdwg.mxu0
        %2826 = vmatpush.bf16.msra.mxu0 %v2048
        %2827 = vmatpush.bf16.msra.mxu0 %v2040
        %2828 = vmatpush.bf16.msra.mxu0 %v2032
        %2829 = vmatpush.bf16.msra.mxu0 %v2024
        %2830 = vmatpush.bf16.msra.mxu0 %v2016
        %2831 = vmatpush.bf16.msra.mxu0 %v2008
        %2832 = vmatpush.bf16.msra.mxu0 %v2000
        %2833 = vmatpush.bf16.msra.mxu0 %v1992
        %2834 = vmatmul.bf16.gmra.mxu0 %v700
        %v2835 = vpop.f32.mrf.mxu0
        %v2836 = vadd.f32 %v2822, %v2835
        %v2837 = vpop.f32.mrf.mxu0
        %v2838 = vadd.f32 %v2824, %v2837
        %2839 = vdwg.mxu0
        %2840 = vmatpush.bf16.msra.mxu0 %v2112
        %2841 = vmatpush.bf16.msra.mxu0 %v2104
        %2842 = vmatpush.bf16.msra.mxu0 %v2096
        %2843 = vmatpush.bf16.msra.mxu0 %v2088
        %2844 = vmatpush.bf16.msra.mxu0 %v2080
        %2845 = vmatpush.bf16.msra.mxu0 %v2072
        %2846 = vmatpush.bf16.msra.mxu0 %v2064
        %2847 = vmatpush.bf16.msra.mxu0 %v2056
        %2848 = vmatmul.bf16.gmra.mxu0 %v701
        %v2849 = vpop.f32.mrf.mxu0
        %v2850 = vadd.f32 %v2836, %v2849
        %v2851 = vpop.f32.mrf.mxu0
        %v2852 = vadd.f32 %v2838, %v2851
        %2853 = vdwg.mxu0
        %2854 = vmatpush.bf16.msra.mxu0 %v2176
        %2855 = vmatpush.bf16.msra.mxu0 %v2168
        %2856 = vmatpush.bf16.msra.mxu0 %v2160
        %2857 = vmatpush.bf16.msra.mxu0 %v2152
        %2858 = vmatpush.bf16.msra.mxu0 %v2144
        %2859 = vmatpush.bf16.msra.mxu0 %v2136
        %2860 = vmatpush.bf16.msra.mxu0 %v2128
        %2861 = vmatpush.bf16.msra.mxu0 %v2120
        %2862 = vmatmul.bf16.gmra.mxu0 %v702
        %v2863 = vpop.f32.mrf.mxu0
        %v2864 = vadd.f32 %v2850, %v2863
        %v2865 = vpop.f32.mrf.mxu0
        %v2866 = vadd.f32 %v2852, %v2865
        %2867 = vdwg.mxu0
        %2868 = vmatpush.bf16.msra.mxu0 %v2240
        %2869 = vmatpush.bf16.msra.mxu0 %v2232
        %2870 = vmatpush.bf16.msra.mxu0 %v2224
        %2871 = vmatpush.bf16.msra.mxu0 %v2216
        %2872 = vmatpush.bf16.msra.mxu0 %v2208
        %2873 = vmatpush.bf16.msra.mxu0 %v2200
        %2874 = vmatpush.bf16.msra.mxu0 %v2192
        %2875 = vmatpush.bf16.msra.mxu0 %v2184
        %2876 = vmatmul.bf16.gmra.mxu0 %v703
        %v2877 = vpop.f32.mrf.mxu0
        %v2878 = vadd.f32 %v2864, %v2877
        %v2879 = vpop.f32.mrf.mxu0
        %v2880 = vadd.f32 %v2866, %v2879
        %2881 = vdwg.mxu0
        %2882 = vmatpush.bf16.msra.mxu0 %v1921
        %2883 = vmatpush.bf16.msra.mxu0 %v1913
        %2884 = vmatpush.bf16.msra.mxu0 %v1905
        %2885 = vmatpush.bf16.msra.mxu0 %v1897
        %2886 = vmatpush.bf16.msra.mxu0 %v1889
        %2887 = vmatpush.bf16.msra.mxu0 %v1881
        %2888 = vmatpush.bf16.msra.mxu0 %v1873
        %2889 = vmatpush.bf16.msra.mxu0 %v1865
        %2890 = vmatmul.bf16.gmra.mxu0 %v698
        %v2891 = vpop.f32.mrf.mxu0
        %v2892 = vadd.f32 %v667, %v2891
        %v2893 = vpop.f32.mrf.mxu0
        %v2894 = vadd.f32 %v667, %v2893
        %2895 = vdwg.mxu0
        %2896 = vmatpush.bf16.msra.mxu0 %v1985
        %2897 = vmatpush.bf16.msra.mxu0 %v1977
        %2898 = vmatpush.bf16.msra.mxu0 %v1969
        %2899 = vmatpush.bf16.msra.mxu0 %v1961
        %2900 = vmatpush.bf16.msra.mxu0 %v1953
        %2901 = vmatpush.bf16.msra.mxu0 %v1945
        %2902 = vmatpush.bf16.msra.mxu0 %v1937
        %2903 = vmatpush.bf16.msra.mxu0 %v1929
        %2904 = vmatmul.bf16.gmra.mxu0 %v699
        %v2905 = vpop.f32.mrf.mxu0
        %v2906 = vadd.f32 %v2892, %v2905
        %v2907 = vpop.f32.mrf.mxu0
        %v2908 = vadd.f32 %v2894, %v2907
        %2909 = vdwg.mxu0
        %2910 = vmatpush.bf16.msra.mxu0 %v2049
        %2911 = vmatpush.bf16.msra.mxu0 %v2041
        %2912 = vmatpush.bf16.msra.mxu0 %v2033
        %2913 = vmatpush.bf16.msra.mxu0 %v2025
        %2914 = vmatpush.bf16.msra.mxu0 %v2017
        %2915 = vmatpush.bf16.msra.mxu0 %v2009
        %2916 = vmatpush.bf16.msra.mxu0 %v2001
        %2917 = vmatpush.bf16.msra.mxu0 %v1993
        %2918 = vmatmul.bf16.gmra.mxu0 %v700
        %v2919 = vpop.f32.mrf.mxu0
        %v2920 = vadd.f32 %v2906, %v2919
        %v2921 = vpop.f32.mrf.mxu0
        %v2922 = vadd.f32 %v2908, %v2921
        %2923 = vdwg.mxu0
        %2924 = vmatpush.bf16.msra.mxu0 %v2113
        %2925 = vmatpush.bf16.msra.mxu0 %v2105
        %2926 = vmatpush.bf16.msra.mxu0 %v2097
        %2927 = vmatpush.bf16.msra.mxu0 %v2089
        %2928 = vmatpush.bf16.msra.mxu0 %v2081
        %2929 = vmatpush.bf16.msra.mxu0 %v2073
        %2930 = vmatpush.bf16.msra.mxu0 %v2065
        %2931 = vmatpush.bf16.msra.mxu0 %v2057
        %2932 = vmatmul.bf16.gmra.mxu0 %v701
        %v2933 = vpop.f32.mrf.mxu0
        %v2934 = vadd.f32 %v2920, %v2933
        %v2935 = vpop.f32.mrf.mxu0
        %v2936 = vadd.f32 %v2922, %v2935
        %2937 = vdwg.mxu0
        %2938 = vmatpush.bf16.msra.mxu0 %v2177
        %2939 = vmatpush.bf16.msra.mxu0 %v2169
        %2940 = vmatpush.bf16.msra.mxu0 %v2161
        %2941 = vmatpush.bf16.msra.mxu0 %v2153
        %2942 = vmatpush.bf16.msra.mxu0 %v2145
        %2943 = vmatpush.bf16.msra.mxu0 %v2137
        %2944 = vmatpush.bf16.msra.mxu0 %v2129
        %2945 = vmatpush.bf16.msra.mxu0 %v2121
        %2946 = vmatmul.bf16.gmra.mxu0 %v702
        %v2947 = vpop.f32.mrf.mxu0
        %v2948 = vadd.f32 %v2934, %v2947
        %v2949 = vpop.f32.mrf.mxu0
        %v2950 = vadd.f32 %v2936, %v2949
        %2951 = vdwg.mxu0
        %2952 = vmatpush.bf16.msra.mxu0 %v2241
        %2953 = vmatpush.bf16.msra.mxu0 %v2233
        %2954 = vmatpush.bf16.msra.mxu0 %v2225
        %2955 = vmatpush.bf16.msra.mxu0 %v2217
        %2956 = vmatpush.bf16.msra.mxu0 %v2209
        %2957 = vmatpush.bf16.msra.mxu0 %v2201
        %2958 = vmatpush.bf16.msra.mxu0 %v2193
        %2959 = vmatpush.bf16.msra.mxu0 %v2185
        %2960 = vmatmul.bf16.gmra.mxu0 %v703
        %v2961 = vpop.f32.mrf.mxu0
        %v2962 = vadd.f32 %v2948, %v2961
        %v2963 = vpop.f32.mrf.mxu0
        %v2964 = vadd.f32 %v2950, %v2963
        %2965 = vdwg.mxu0
        %2966 = vmatpush.bf16.msra.mxu0 %v1922
        %2967 = vmatpush.bf16.msra.mxu0 %v1914
        %2968 = vmatpush.bf16.msra.mxu0 %v1906
        %2969 = vmatpush.bf16.msra.mxu0 %v1898
        %2970 = vmatpush.bf16.msra.mxu0 %v1890
        %2971 = vmatpush.bf16.msra.mxu0 %v1882
        %2972 = vmatpush.bf16.msra.mxu0 %v1874
        %2973 = vmatpush.bf16.msra.mxu0 %v1866
        %2974 = vmatmul.bf16.gmra.mxu0 %v698
        %v2975 = vpop.f32.mrf.mxu0
        %v2976 = vadd.f32 %v668, %v2975
        %v2977 = vpop.f32.mrf.mxu0
        %v2978 = vadd.f32 %v668, %v2977
        %2979 = vdwg.mxu0
        %2980 = vmatpush.bf16.msra.mxu0 %v1986
        %2981 = vmatpush.bf16.msra.mxu0 %v1978
        %2982 = vmatpush.bf16.msra.mxu0 %v1970
        %2983 = vmatpush.bf16.msra.mxu0 %v1962
        %2984 = vmatpush.bf16.msra.mxu0 %v1954
        %2985 = vmatpush.bf16.msra.mxu0 %v1946
        %2986 = vmatpush.bf16.msra.mxu0 %v1938
        %2987 = vmatpush.bf16.msra.mxu0 %v1930
        %2988 = vmatmul.bf16.gmra.mxu0 %v699
        %v2989 = vpop.f32.mrf.mxu0
        %v2990 = vadd.f32 %v2976, %v2989
        %v2991 = vpop.f32.mrf.mxu0
        %v2992 = vadd.f32 %v2978, %v2991
        %2993 = vdwg.mxu0
        %2994 = vmatpush.bf16.msra.mxu0 %v2050
        %2995 = vmatpush.bf16.msra.mxu0 %v2042
        %2996 = vmatpush.bf16.msra.mxu0 %v2034
        %2997 = vmatpush.bf16.msra.mxu0 %v2026
        %2998 = vmatpush.bf16.msra.mxu0 %v2018
        %2999 = vmatpush.bf16.msra.mxu0 %v2010
        %3000 = vmatpush.bf16.msra.mxu0 %v2002
        %3001 = vmatpush.bf16.msra.mxu0 %v1994
        %3002 = vmatmul.bf16.gmra.mxu0 %v700
        %v3003 = vpop.f32.mrf.mxu0
        %v3004 = vadd.f32 %v2990, %v3003
        %v3005 = vpop.f32.mrf.mxu0
        %v3006 = vadd.f32 %v2992, %v3005
        %3007 = vdwg.mxu0
        %3008 = vmatpush.bf16.msra.mxu0 %v2114
        %3009 = vmatpush.bf16.msra.mxu0 %v2106
        %3010 = vmatpush.bf16.msra.mxu0 %v2098
        %3011 = vmatpush.bf16.msra.mxu0 %v2090
        %3012 = vmatpush.bf16.msra.mxu0 %v2082
        %3013 = vmatpush.bf16.msra.mxu0 %v2074
        %3014 = vmatpush.bf16.msra.mxu0 %v2066
        %3015 = vmatpush.bf16.msra.mxu0 %v2058
        %3016 = vmatmul.bf16.gmra.mxu0 %v701
        %v3017 = vpop.f32.mrf.mxu0
        %v3018 = vadd.f32 %v3004, %v3017
        %v3019 = vpop.f32.mrf.mxu0
        %v3020 = vadd.f32 %v3006, %v3019
        %3021 = vdwg.mxu0
        %3022 = vmatpush.bf16.msra.mxu0 %v2178
        %3023 = vmatpush.bf16.msra.mxu0 %v2170
        %3024 = vmatpush.bf16.msra.mxu0 %v2162
        %3025 = vmatpush.bf16.msra.mxu0 %v2154
        %3026 = vmatpush.bf16.msra.mxu0 %v2146
        %3027 = vmatpush.bf16.msra.mxu0 %v2138
        %3028 = vmatpush.bf16.msra.mxu0 %v2130
        %3029 = vmatpush.bf16.msra.mxu0 %v2122
        %3030 = vmatmul.bf16.gmra.mxu0 %v702
        %v3031 = vpop.f32.mrf.mxu0
        %v3032 = vadd.f32 %v3018, %v3031
        %v3033 = vpop.f32.mrf.mxu0
        %v3034 = vadd.f32 %v3020, %v3033
        %3035 = vdwg.mxu0
        %3036 = vmatpush.bf16.msra.mxu0 %v2242
        %3037 = vmatpush.bf16.msra.mxu0 %v2234
        %3038 = vmatpush.bf16.msra.mxu0 %v2226
        %3039 = vmatpush.bf16.msra.mxu0 %v2218
        %3040 = vmatpush.bf16.msra.mxu0 %v2210
        %3041 = vmatpush.bf16.msra.mxu0 %v2202
        %3042 = vmatpush.bf16.msra.mxu0 %v2194
        %3043 = vmatpush.bf16.msra.mxu0 %v2186
        %3044 = vmatmul.bf16.gmra.mxu0 %v703
        %v3045 = vpop.f32.mrf.mxu0
        %v3046 = vadd.f32 %v3032, %v3045
        %v3047 = vpop.f32.mrf.mxu0
        %v3048 = vadd.f32 %v3034, %v3047
        %3049 = vdwg.mxu0
        %3050 = vmatpush.bf16.msra.mxu0 %v1923
        %3051 = vmatpush.bf16.msra.mxu0 %v1915
        %3052 = vmatpush.bf16.msra.mxu0 %v1907
        %3053 = vmatpush.bf16.msra.mxu0 %v1899
        %3054 = vmatpush.bf16.msra.mxu0 %v1891
        %3055 = vmatpush.bf16.msra.mxu0 %v1883
        %3056 = vmatpush.bf16.msra.mxu0 %v1875
        %3057 = vmatpush.bf16.msra.mxu0 %v1867
        %3058 = vmatmul.bf16.gmra.mxu0 %v698
        %v3059 = vpop.f32.mrf.mxu0
        %v3060 = vadd.f32 %v669, %v3059
        %v3061 = vpop.f32.mrf.mxu0
        %v3062 = vadd.f32 %v669, %v3061
        %3063 = vdwg.mxu0
        %3064 = vmatpush.bf16.msra.mxu0 %v1987
        %3065 = vmatpush.bf16.msra.mxu0 %v1979
        %3066 = vmatpush.bf16.msra.mxu0 %v1971
        %3067 = vmatpush.bf16.msra.mxu0 %v1963
        %3068 = vmatpush.bf16.msra.mxu0 %v1955
        %3069 = vmatpush.bf16.msra.mxu0 %v1947
        %3070 = vmatpush.bf16.msra.mxu0 %v1939
        %3071 = vmatpush.bf16.msra.mxu0 %v1931
        %3072 = vmatmul.bf16.gmra.mxu0 %v699
        %v3073 = vpop.f32.mrf.mxu0
        %v3074 = vadd.f32 %v3060, %v3073
        %v3075 = vpop.f32.mrf.mxu0
        %v3076 = vadd.f32 %v3062, %v3075
        %3077 = vdwg.mxu0
        %3078 = vmatpush.bf16.msra.mxu0 %v2051
        %3079 = vmatpush.bf16.msra.mxu0 %v2043
        %3080 = vmatpush.bf16.msra.mxu0 %v2035
        %3081 = vmatpush.bf16.msra.mxu0 %v2027
        %3082 = vmatpush.bf16.msra.mxu0 %v2019
        %3083 = vmatpush.bf16.msra.mxu0 %v2011
        %3084 = vmatpush.bf16.msra.mxu0 %v2003
        %3085 = vmatpush.bf16.msra.mxu0 %v1995
        %3086 = vmatmul.bf16.gmra.mxu0 %v700
        %v3087 = vpop.f32.mrf.mxu0
        %v3088 = vadd.f32 %v3074, %v3087
        %v3089 = vpop.f32.mrf.mxu0
        %v3090 = vadd.f32 %v3076, %v3089
        %3091 = vdwg.mxu0
        %3092 = vmatpush.bf16.msra.mxu0 %v2115
        %3093 = vmatpush.bf16.msra.mxu0 %v2107
        %3094 = vmatpush.bf16.msra.mxu0 %v2099
        %3095 = vmatpush.bf16.msra.mxu0 %v2091
        %3096 = vmatpush.bf16.msra.mxu0 %v2083
        %3097 = vmatpush.bf16.msra.mxu0 %v2075
        %3098 = vmatpush.bf16.msra.mxu0 %v2067
        %3099 = vmatpush.bf16.msra.mxu0 %v2059
        %3100 = vmatmul.bf16.gmra.mxu0 %v701
        %v3101 = vpop.f32.mrf.mxu0
        %v3102 = vadd.f32 %v3088, %v3101
        %v3103 = vpop.f32.mrf.mxu0
        %v3104 = vadd.f32 %v3090, %v3103
        %3105 = vdwg.mxu0
        %3106 = vmatpush.bf16.msra.mxu0 %v2179
        %3107 = vmatpush.bf16.msra.mxu0 %v2171
        %3108 = vmatpush.bf16.msra.mxu0 %v2163
        %3109 = vmatpush.bf16.msra.mxu0 %v2155
        %3110 = vmatpush.bf16.msra.mxu0 %v2147
        %3111 = vmatpush.bf16.msra.mxu0 %v2139
        %3112 = vmatpush.bf16.msra.mxu0 %v2131
        %3113 = vmatpush.bf16.msra.mxu0 %v2123
        %3114 = vmatmul.bf16.gmra.mxu0 %v702
        %v3115 = vpop.f32.mrf.mxu0
        %v3116 = vadd.f32 %v3102, %v3115
        %v3117 = vpop.f32.mrf.mxu0
        %v3118 = vadd.f32 %v3104, %v3117
        %3119 = vdwg.mxu0
        %3120 = vmatpush.bf16.msra.mxu0 %v2243
        %3121 = vmatpush.bf16.msra.mxu0 %v2235
        %3122 = vmatpush.bf16.msra.mxu0 %v2227
        %3123 = vmatpush.bf16.msra.mxu0 %v2219
        %3124 = vmatpush.bf16.msra.mxu0 %v2211
        %3125 = vmatpush.bf16.msra.mxu0 %v2203
        %3126 = vmatpush.bf16.msra.mxu0 %v2195
        %3127 = vmatpush.bf16.msra.mxu0 %v2187
        %3128 = vmatmul.bf16.gmra.mxu0 %v703
        %v3129 = vpop.f32.mrf.mxu0
        %v3130 = vadd.f32 %v3116, %v3129
        %v3131 = vpop.f32.mrf.mxu0
        %v3132 = vadd.f32 %v3118, %v3131
        %3133 = vdwg.mxu0
        %3134 = vmatpush.bf16.msra.mxu0 %v1924
        %3135 = vmatpush.bf16.msra.mxu0 %v1916
        %3136 = vmatpush.bf16.msra.mxu0 %v1908
        %3137 = vmatpush.bf16.msra.mxu0 %v1900
        %3138 = vmatpush.bf16.msra.mxu0 %v1892
        %3139 = vmatpush.bf16.msra.mxu0 %v1884
        %3140 = vmatpush.bf16.msra.mxu0 %v1876
        %3141 = vmatpush.bf16.msra.mxu0 %v1868
        %3142 = vmatmul.bf16.gmra.mxu0 %v698
        %v3143 = vpop.f32.mrf.mxu0
        %v3144 = vadd.f32 %v670, %v3143
        %v3145 = vpop.f32.mrf.mxu0
        %v3146 = vadd.f32 %v670, %v3145
        %3147 = vdwg.mxu0
        %3148 = vmatpush.bf16.msra.mxu0 %v1988
        %3149 = vmatpush.bf16.msra.mxu0 %v1980
        %3150 = vmatpush.bf16.msra.mxu0 %v1972
        %3151 = vmatpush.bf16.msra.mxu0 %v1964
        %3152 = vmatpush.bf16.msra.mxu0 %v1956
        %3153 = vmatpush.bf16.msra.mxu0 %v1948
        %3154 = vmatpush.bf16.msra.mxu0 %v1940
        %3155 = vmatpush.bf16.msra.mxu0 %v1932
        %3156 = vmatmul.bf16.gmra.mxu0 %v699
        %v3157 = vpop.f32.mrf.mxu0
        %v3158 = vadd.f32 %v3144, %v3157
        %v3159 = vpop.f32.mrf.mxu0
        %v3160 = vadd.f32 %v3146, %v3159
        %3161 = vdwg.mxu0
        %3162 = vmatpush.bf16.msra.mxu0 %v2052
        %3163 = vmatpush.bf16.msra.mxu0 %v2044
        %3164 = vmatpush.bf16.msra.mxu0 %v2036
        %3165 = vmatpush.bf16.msra.mxu0 %v2028
        %3166 = vmatpush.bf16.msra.mxu0 %v2020
        %3167 = vmatpush.bf16.msra.mxu0 %v2012
        %3168 = vmatpush.bf16.msra.mxu0 %v2004
        %3169 = vmatpush.bf16.msra.mxu0 %v1996
        %3170 = vmatmul.bf16.gmra.mxu0 %v700
        %v3171 = vpop.f32.mrf.mxu0
        %v3172 = vadd.f32 %v3158, %v3171
        %v3173 = vpop.f32.mrf.mxu0
        %v3174 = vadd.f32 %v3160, %v3173
        %3175 = vdwg.mxu0
        %3176 = vmatpush.bf16.msra.mxu0 %v2116
        %3177 = vmatpush.bf16.msra.mxu0 %v2108
        %3178 = vmatpush.bf16.msra.mxu0 %v2100
        %3179 = vmatpush.bf16.msra.mxu0 %v2092
        %3180 = vmatpush.bf16.msra.mxu0 %v2084
        %3181 = vmatpush.bf16.msra.mxu0 %v2076
        %3182 = vmatpush.bf16.msra.mxu0 %v2068
        %3183 = vmatpush.bf16.msra.mxu0 %v2060
        %3184 = vmatmul.bf16.gmra.mxu0 %v701
        %v3185 = vpop.f32.mrf.mxu0
        %v3186 = vadd.f32 %v3172, %v3185
        %v3187 = vpop.f32.mrf.mxu0
        %v3188 = vadd.f32 %v3174, %v3187
        %3189 = vdwg.mxu0
        %3190 = vmatpush.bf16.msra.mxu0 %v2180
        %3191 = vmatpush.bf16.msra.mxu0 %v2172
        %3192 = vmatpush.bf16.msra.mxu0 %v2164
        %3193 = vmatpush.bf16.msra.mxu0 %v2156
        %3194 = vmatpush.bf16.msra.mxu0 %v2148
        %3195 = vmatpush.bf16.msra.mxu0 %v2140
        %3196 = vmatpush.bf16.msra.mxu0 %v2132
        %3197 = vmatpush.bf16.msra.mxu0 %v2124
        %3198 = vmatmul.bf16.gmra.mxu0 %v702
        %v3199 = vpop.f32.mrf.mxu0
        %v3200 = vadd.f32 %v3186, %v3199
        %v3201 = vpop.f32.mrf.mxu0
        %v3202 = vadd.f32 %v3188, %v3201
        %3203 = vdwg.mxu0
        %3204 = vmatpush.bf16.msra.mxu0 %v2244
        %3205 = vmatpush.bf16.msra.mxu0 %v2236
        %3206 = vmatpush.bf16.msra.mxu0 %v2228
        %3207 = vmatpush.bf16.msra.mxu0 %v2220
        %3208 = vmatpush.bf16.msra.mxu0 %v2212
        %3209 = vmatpush.bf16.msra.mxu0 %v2204
        %3210 = vmatpush.bf16.msra.mxu0 %v2196
        %3211 = vmatpush.bf16.msra.mxu0 %v2188
        %3212 = vmatmul.bf16.gmra.mxu0 %v703
        %v3213 = vpop.f32.mrf.mxu0
        %v3214 = vadd.f32 %v3200, %v3213
        %v3215 = vpop.f32.mrf.mxu0
        %v3216 = vadd.f32 %v3202, %v3215
        %3217 = vdwg.mxu0
        %3218 = vmatpush.bf16.msra.mxu0 %v1925
        %3219 = vmatpush.bf16.msra.mxu0 %v1917
        %3220 = vmatpush.bf16.msra.mxu0 %v1909
        %3221 = vmatpush.bf16.msra.mxu0 %v1901
        %3222 = vmatpush.bf16.msra.mxu0 %v1893
        %3223 = vmatpush.bf16.msra.mxu0 %v1885
        %3224 = vmatpush.bf16.msra.mxu0 %v1877
        %3225 = vmatpush.bf16.msra.mxu0 %v1869
        %3226 = vmatmul.bf16.gmra.mxu0 %v698
        %v3227 = vpop.f32.mrf.mxu0
        %v3228 = vadd.f32 %v671, %v3227
        %v3229 = vpop.f32.mrf.mxu0
        %v3230 = vadd.f32 %v671, %v3229
        %3231 = vdwg.mxu0
        %3232 = vmatpush.bf16.msra.mxu0 %v1989
        %3233 = vmatpush.bf16.msra.mxu0 %v1981
        %3234 = vmatpush.bf16.msra.mxu0 %v1973
        %3235 = vmatpush.bf16.msra.mxu0 %v1965
        %3236 = vmatpush.bf16.msra.mxu0 %v1957
        %3237 = vmatpush.bf16.msra.mxu0 %v1949
        %3238 = vmatpush.bf16.msra.mxu0 %v1941
        %3239 = vmatpush.bf16.msra.mxu0 %v1933
        %3240 = vmatmul.bf16.gmra.mxu0 %v699
        %v3241 = vpop.f32.mrf.mxu0
        %v3242 = vadd.f32 %v3228, %v3241
        %v3243 = vpop.f32.mrf.mxu0
        %v3244 = vadd.f32 %v3230, %v3243
        %3245 = vdwg.mxu0
        %3246 = vmatpush.bf16.msra.mxu0 %v2053
        %3247 = vmatpush.bf16.msra.mxu0 %v2045
        %3248 = vmatpush.bf16.msra.mxu0 %v2037
        %3249 = vmatpush.bf16.msra.mxu0 %v2029
        %3250 = vmatpush.bf16.msra.mxu0 %v2021
        %3251 = vmatpush.bf16.msra.mxu0 %v2013
        %3252 = vmatpush.bf16.msra.mxu0 %v2005
        %3253 = vmatpush.bf16.msra.mxu0 %v1997
        %3254 = vmatmul.bf16.gmra.mxu0 %v700
        %v3255 = vpop.f32.mrf.mxu0
        %v3256 = vadd.f32 %v3242, %v3255
        %v3257 = vpop.f32.mrf.mxu0
        %v3258 = vadd.f32 %v3244, %v3257
        %3259 = vdwg.mxu0
        %3260 = vmatpush.bf16.msra.mxu0 %v2117
        %3261 = vmatpush.bf16.msra.mxu0 %v2109
        %3262 = vmatpush.bf16.msra.mxu0 %v2101
        %3263 = vmatpush.bf16.msra.mxu0 %v2093
        %3264 = vmatpush.bf16.msra.mxu0 %v2085
        %3265 = vmatpush.bf16.msra.mxu0 %v2077
        %3266 = vmatpush.bf16.msra.mxu0 %v2069
        %3267 = vmatpush.bf16.msra.mxu0 %v2061
        %3268 = vmatmul.bf16.gmra.mxu0 %v701
        %v3269 = vpop.f32.mrf.mxu0
        %v3270 = vadd.f32 %v3256, %v3269
        %v3271 = vpop.f32.mrf.mxu0
        %v3272 = vadd.f32 %v3258, %v3271
        %3273 = vdwg.mxu0
        %3274 = vmatpush.bf16.msra.mxu0 %v2181
        %3275 = vmatpush.bf16.msra.mxu0 %v2173
        %3276 = vmatpush.bf16.msra.mxu0 %v2165
        %3277 = vmatpush.bf16.msra.mxu0 %v2157
        %3278 = vmatpush.bf16.msra.mxu0 %v2149
        %3279 = vmatpush.bf16.msra.mxu0 %v2141
        %3280 = vmatpush.bf16.msra.mxu0 %v2133
        %3281 = vmatpush.bf16.msra.mxu0 %v2125
        %3282 = vmatmul.bf16.gmra.mxu0 %v702
        %v3283 = vpop.f32.mrf.mxu0
        %v3284 = vadd.f32 %v3270, %v3283
        %v3285 = vpop.f32.mrf.mxu0
        %v3286 = vadd.f32 %v3272, %v3285
        %3287 = vdwg.mxu0
        %3288 = vmatpush.bf16.msra.mxu0 %v2245
        %3289 = vmatpush.bf16.msra.mxu0 %v2237
        %3290 = vmatpush.bf16.msra.mxu0 %v2229
        %3291 = vmatpush.bf16.msra.mxu0 %v2221
        %3292 = vmatpush.bf16.msra.mxu0 %v2213
        %3293 = vmatpush.bf16.msra.mxu0 %v2205
        %3294 = vmatpush.bf16.msra.mxu0 %v2197
        %3295 = vmatpush.bf16.msra.mxu0 %v2189
        %3296 = vmatmul.bf16.gmra.mxu0 %v703
        %v3297 = vpop.f32.mrf.mxu0
        %v3298 = vadd.f32 %v3284, %v3297
        %v3299 = vpop.f32.mrf.mxu0
        %v3300 = vadd.f32 %v3286, %v3299
        %3301 = vdwg.mxu0
        %v3302 = vpack.c.bf16 %v2794, %v2710
        %v3303 = vpack.c.bf16 %v2962, %v2878
        %v3304 = vpack.c.bf16 %v3130, %v3046
        %v3305 = vpack.c.bf16 %v3298, %v3214
        %v3306 = vpack.c.bf16 %v2796, %v2712
        %v3307 = vpack.c.bf16 %v2964, %v2880
        %v3308 = vpack.c.bf16 %v3132, %v3048
        %v3309 = vpack.c.bf16 %v3300, %v3216
        %3310 = vst [vmem:[%s266] sm:$0xff] %v3302
        %3311 = vst [vmem:[%s266 + $0x8] sm:$0xff] %v3303
        %3312 = vst [vmem:[%s266 + $0x10] sm:$0xff] %v3304
        %3313 = vst [vmem:[%s266 + $0x18] sm:$0xff] %v3305
        %3314 = vst [vmem:[%s266 + $0x20] sm:$0xff] %v3306
        %3315 = vst [vmem:[%s266 + $0x28] sm:$0xff] %v3307
        %3316 = vst [vmem:[%s266 + $0x30] sm:$0xff] %v3308
        %3317 = vst [vmem:[%s266 + $0x38] sm:$0xff] %v3309
        %s3318 = sand.u32 %s121, 1
        %s3319 = scalar_lea.sflag [#allocation4], %s3318
        %s3320 = sand.u32 %s121, 1
        %s3321 = smul.addr %s3320, 64
        %s3322 = scalar_lea.vmem [#allocation8], %s3321
        // Predicated region
        $region45: #{tpu_custom_call.1} parent=31 // pred_check
          %p3323 = pneg %p131
        $region46: #{tpu_custom_call.1} parent=31 // pred_check_branch
          %3325 = sbr.rel (%p3323) target = $region48
        $region47: #{tpu_custom_call.1} parent=31 // pred_region
          %s3326 = smul.u32 2, %s26
          %s3327 = smul.u32 8, %s25
          %3329 = vsyncadd %s3319, 0
          %s3330 = smul.addr %s3326, 24
          %s3331 = sadd.s32 %s3327, %s3330
          %s3332 = smul.addr %s3331, 4
          %s3333 = scalar_lea.hbm %s3, %s3332
          %s3334 = sshll.u32 %s3322, 4
          %s3335 = int_to_ptr.vmem [resolvable:$true] %s3334
          %s3336 = sshll.u32 %s3333, 4
          %s3337 = int_to_ptr.hbm [resolvable:$true] %s3336
          %3342 = dma.vmem_to_hbm [thread:$0]  %s3335, 1024, %s3337, %s3319, 512, 1536, 32
        $region48: #{tpu_custom_call.1} parent=31 // pred_fallthru
          _
      $region32: #{tpu_custom_call.1} parent=5 // pred_fallthru
        _
      %p3343 = scmp.le.s32.totalorder 2, %s16
      // Predicated region
      $region49: #{tpu_custom_call.1} parent=5 // pred_check
        %p3344 = pneg %p3343
      $region50: #{tpu_custom_call.1} parent=5 // pred_check_branch
        %3346 = sbr.rel (%p3344) target = $region52
      $region51: #{tpu_custom_call.1} parent=5 // pred_region
        %s3347 = ssub.s32 %s16, 2
        // Predicated region
        $region53: #{tpu_custom_call.1} parent=51 // pred_check
          %p3348 = pneg %p137
        $region54: #{tpu_custom_call.1} parent=51 // pred_check_branch
          %3350 = sbr.rel (%p3348) target = $region56
        $region55: #{tpu_custom_call.1} parent=51 // pred_region
          %s3351 = sand.u32 %s122, 1
          %s3352 = scalar_lea.sflag [#allocation4], %s3351
          %s3353 = sand.u32 %s122, 1
          %s3354 = smul.addr %s3353, 64
          %s3355 = scalar_lea.vmem [#allocation8], %s3354
          %3357 = dma.done %s3352, 1024
        $region56: #{tpu_custom_call.1} parent=51 // pred_fallthru
          _
      $region52: #{tpu_custom_call.1} parent=5 // pred_fallthru
        _
    $region6: #{tpu_custom_call.1} parent=1 // loop_footer
      %s20 = sadd.s32 1, %s16
    $region7: #{tpu_custom_call.1} parent=1 // loop_footer_branch
      %15 = sbr.rel target = $region3
    $region8: #{tpu_custom_call.1} parent=1 // loop_exit
      _
    %3358 = vsyncpa [#allocation3], 1
    %s3359 = scalar_lea.sflag [#allocation3], 1
    %3360 = vsyncpa %s3359, 1
    %3361 = vsyncpa [#allocation6], 1
    %s3362 = scalar_lea.sflag [#allocation6], 1
    %3363 = vsyncpa %s3362, 1
    %3364 = vsyncpa [#allocation4], 1
    %s3365 = scalar_lea.sflag [#allocation4], 1
    %3366 = vsyncpa %s3365, 1

</llo_original>
